<compile_context>
chip_gen: v7x
topology: tpu7x:2x2x1
jax: 0.10.0
libtpu: 0.0.40
codegen_flags: <defaults>
</compile_context>

<pallas_src>
import math
import functools

import jax
import jax.numpy as jnp
from jax.experimental import pallas as pl
from jax.experimental.pallas import tpu as pltpu


def _num_tensorcores():
    """Best-effort detection of per-chip TensorCore count (v7x has 2)."""
    try:
        kind = (getattr(jax.devices()[0], "device_kind", "") or "").lower()
        if "v7" in kind:
            return 2
    except Exception:
        pass
    return 1


def _default_batch_block(B, W, D, H, K):
    """Pick batch elements per grid step.

    Default is Bblk = B (single grid step): on single-TC chips the grid is a
    purely serial loop, so fewer/larger steps means less fixed per-step
    overhead and better MXU row fill on the (Bblk*W, K*D) projection GEMM.
    Only split across real TensorCores (v7x) when each core still gets a
    reasonably large GEMM.  A VMEM-aware cap keeps the per-step footprint well
    under the scoped-VMEM default (32 MiB on v7x) as shapes scale.
    """
    HD = H * D
    # Rough per-batch-element live bytes inside one step (double-buffered
    # bf16 im2col block, f32 qkv, bf16 q/k/v, per-head f32 scores, f32/bf16
    # head outputs, double-buffered f32 output block).
    per_elem = (W * (K * D * 2 * 2 + 3 * HD * 4 + 3 * HD * 2 + HD * 4 + HD * 2 + D * 4 * 2)
                + H * W * W * 4)
    vmem_budget = 8 << 20                      # ~1/4 of the smallest scoped default
    cap = max(1, vmem_budget // max(per_elem, 1))

    n_cores = _num_tensorcores()
    if n_cores > 1 and B % n_cores == 0 and (B // n_cores) * W >= 256:
        target = B // n_cores                  # shard grid across v7x TCs
    else:
        target = B                             # single grid step
    bblk = max(1, min(target, cap))
    while B % bblk != 0:                       # must evenly divide the batch
        bblk -= 1
    return bblk


def make_conv_attention_kernel(B, W, D, H, K, Bblk):
    """Builds the pallas_call for given static shapes.

    B: batch, W: sequence length, D: d_model, H: num_heads, K: conv kernel
    size, Bblk: batch elements processed per grid step.  The kernel consumes a
    pre-built bf16 im2col tensor of shape (B, W, K*D).
    """
    HD = H * D
    KD = K * D
    assert B % Bblk == 0

    def kernel(x_ref, wqkv_ref, bqkv_ref, wo_ref, bo_ref, o_ref):
        # ---- single fused QKV projection GEMM (im2col built in the wrapper) --
        im2col = x_ref[...].reshape(Bblk * W, KD)          # bf16, free reshape
        qkv = jnp.dot(im2col, wqkv_ref[...],
                      preferred_element_type=jnp.float32)  # (Bblk*W, 3*HD) f32
        qkv = qkv + bqkv_ref[...]                          # single fused bias add
        qkv_b = qkv.astype(jnp.bfloat16)                   # MXU operand dtype

        def heads_view(col0):                              # (Bblk, W, HD) bf16
            return qkv_b[:, col0:col0 + HD].reshape(Bblk, W, HD)

        q = heads_view(0)            # 1/sqrt(d_model) already folded into Wq/bq
        kk = heads_view(HD)
        v = heads_view(2 * HD)

        # ---- per-head attention, batched over the Bblk block -----------------
        # Static unroll over H (small); each einsum is a 3-D single-batch-dim
        # dot (proven Mosaic lowering).  See header note on why the fully
        # batched multi-head dot_general was not adopted.
        ohs = []
        for h in range(H):
            lo = h * D
            qh = q[:, :, lo:lo + D]                        # (Bblk, W, D) bf16
            kh = kk[:, :, lo:lo + D]
            vh = v[:, :, lo:lo + D]
            s = jnp.einsum("bqd,bkd->bqk", qh, kh,
                           preferred_element_type=jnp.float32)   # (Bblk, W, W) f32
            s = s - jnp.max(s, axis=-1, keepdims=True)
            p = jnp.exp(s)
            p = p * pl.reciprocal(jnp.sum(p, axis=-1, keepdims=True), approx=True)
            oh = jnp.einsum("bqk,bkd->bqd", p.astype(jnp.bfloat16), vh,
                            preferred_element_type=jnp.float32)
            ohs.append(oh.astype(jnp.bfloat16))            # bf16 BEFORE lane concat

        # ---- fused output projection: one 128-deep GEMM -----------------------
        o_heads = jnp.concatenate(ohs, axis=-1).reshape(Bblk * W, HD)  # bf16
        out = jnp.dot(o_heads, wo_ref[...],
                      preferred_element_type=jnp.float32) + bo_ref[...]
        o_ref[...] = out.reshape(Bblk, W, D).astype(o_ref.dtype)

    return pl.pallas_call(
        kernel,
        out_shape=jax.ShapeDtypeStruct((B, W, D), jnp.float32),
        grid_spec=pltpu.PrefetchScalarGridSpec(
            num_scalar_prefetch=0,
            grid=(B // Bblk,),
            in_specs=[
                pl.BlockSpec((Bblk, W, KD), lambda b: (b, 0, 0)),  # im2col (bf16)
                pl.BlockSpec((KD, 3 * HD), lambda b: (0, 0)),      # fused Wqkv (bf16)
                pl.BlockSpec((1, 3 * HD), lambda b: (0, 0)),       # fused bias (f32)
                pl.BlockSpec((HD, D), lambda b: (0, 0)),           # Wo (bf16)
                pl.BlockSpec((1, D), lambda b: (0, 0)),            # bo (f32)
            ],
            out_specs=pl.BlockSpec((Bblk, W, D), lambda b: (b, 0, 0)),
        ),
        compiler_params=pltpu.CompilerParams(
            dimension_semantics=("parallel",)),
    )


def conv_attention_layer(x, params, *, num_heads, kernel_size, padding,
                         batch_block=None):
    """x: (B, W, D) float32. Returns (B, W, D) float32."""
    B, W, D = x.shape
    H, K, P = num_heads, kernel_size, padding
    assert W + 2 * P - K + 1 == W, "kernel assumes a 'same'-size Conv1d output"
    HD = H * D
    scale = 1.0 / math.sqrt(D)

    # ---- wrapper-side im2col (cheap XLA ops; removes in-kernel relayouts) ----
    xp = jnp.pad(x, ((0, 0), (P, P), (0, 0)))                       # (B, W+2P, D)
    im2col = jnp.concatenate([xp[:, k:k + W, :] for k in range(K)], axis=-1)
    im2col = im2col.astype(jnp.bfloat16)                            # (B, W, K*D)

    # Fold the attention scale into the Q projection (free at trace time) and
    # fuse Wq/Wk/Wv into one (K*D, 3*HD) operand for a single im2col GEMM.
    # Weights are cast to bf16 (MXU operands); biases stay f32.
    wqkv = jnp.concatenate(
        [params["wq"] * scale, params["wk"], params["wv"]], axis=-1)   # (K, D, 3HD)
    wqkv = wqkv.reshape(K * D, 3 * HD).astype(jnp.bfloat16)
    bqkv = jnp.concatenate(
        [params["bq"] * scale, params["bk"], params["bv"]], axis=-1)   # (1, 3HD) f32
    wo = params["wo"].astype(jnp.bfloat16)

    Bblk = batch_block if batch_block is not None else _default_batch_block(B, W, D, H, K)
    call = make_conv_attention_kernel(B, W, D, H, K, Bblk)
    return call(im2col, wqkv, bqkv, wo, params["bo"])


def reference(x, params, *, num_heads, kernel_size, padding):
    """Pure-JAX f32 reference matching the PyTorch forward semantics."""
    B, W, D = x.shape
    H, K, P = num_heads, kernel_size, padding
    xp = jnp.pad(x, ((0, 0), (P, P), (0, 0)))

    def conv(w, b):
        acc = sum(jnp.einsum("bwd,de->bwe", xp[:, k:k + W, :], w[k])
                  for k in range(K))
        return acc + b  # (B, W, H*D)

    def heads(y):  # 'b w (h l) -> b h w l'
        return y.reshape(B, W, H, D).transpose(0, 2, 1, 3)

    q = heads(conv(params["wq"], params["bq"]))
    k = heads(conv(params["wk"], params["bk"]))
    v = heads(conv(params["wv"], params["bv"]))

    s = jnp.einsum("bhwl,bhul->bhwu", q, k) / math.sqrt(D)
    p = jax.nn.softmax(s, axis=-1)
    o = jnp.einsum("bhwu,bhul->bhwl", p, v)                  # (B, H, W, D)
    o = o.transpose(0, 2, 1, 3).reshape(B, W, H * D)         # (B, W, H*D)
    return o @ params["wo"] + params["bo"]


def init_params(key, d_model, num_heads, kernel_size):
    HD = d_model * num_heads
    ks = jax.random.split(key, 8)
    conv_scale = 1.0 / math.sqrt(d_model * kernel_size)
    lin_scale = 1.0 / math.sqrt(HD)
    return {
        # conv weights stored as (K, D_in, H*D_out)
        "wq": jax.random.normal(ks[0], (kernel_size, d_model, HD), jnp.float32) * conv_scale,
        "bq": jax.random.normal(ks[1], (1, HD), jnp.float32) * conv_scale,
        "wk": jax.random.normal(ks[2], (kernel_size, d_model, HD), jnp.float32) * conv_scale,
        "bk": jax.random.normal(ks[3], (1, HD), jnp.float32) * conv_scale,
        "wv": jax.random.normal(ks[4], (kernel_size, d_model, HD), jnp.float32) * conv_scale,
        "bv": jax.random.normal(ks[5], (1, HD), jnp.float32) * conv_scale,
        # output projection: (H*D, D) == nn.Linear(H*D, D).weight.T
        "wo": jax.random.normal(ks[6], (HD, d_model), jnp.float32) * lin_scale,
        "bo": jax.random.normal(ks[7], (1, d_model), jnp.float32) * lin_scale,
    }


if __name__ == "__main__":
    B, W, D = 4, 16, 32          # batch, seq length, d_model
    H, K, P = 4, 3, 1            # num_heads, kernel_size, padding ("same")

    key = jax.random.PRNGKey(0)
    kx, kp = jax.random.split(key)
    x = jax.random.normal(kx, (B, W, D), jnp.float32)
    params = init_params(kp, D, H, K)

    run = jax.jit(functools.partial(conv_attention_layer,
                                    num_heads=H, kernel_size=K, padding=P))
    out = jax.block_until_ready(run(x, params))

    ref = reference(x, params, num_heads=H, kernel_size=K, padding=P)
    assert out.shape == (B, W, D)
    # bf16 MXU operands (f32 accumulation) -> relaxed tolerance vs f32 reference.
    assert jnp.allclose(out, ref, atol=5e-2, rtol=5e-2), "mismatch vs reference"

    print("KERNEL_OK")
</pallas_src>

<mosaic_0001>
module attributes {stable_mosaic.version = 11 : i64} {
  func.func @kernel(%arg0: i32, %arg1: memref<4x16x96xbf16, #tpu.memory_space<vmem>>, %arg2: memref<96x384xbf16, #tpu.memory_space<vmem>>, %arg3: memref<1x384xf32, #tpu.memory_space<vmem>>, %arg4: memref<128x32xbf16, #tpu.memory_space<vmem>>, %arg5: memref<1x32xf32, #tpu.memory_space<vmem>>, %arg6: memref<4x16x32xf32, #tpu.memory_space<vmem>>) attributes {dimension_semantics = [#tpu.dimension_semantics<parallel>], iteration_bounds = array<i64: 1>, scalar_prefetch = 0 : i64, scratch_operands = 0 : i64, tpu.core_type = #tpu.core_type<tc>, window_params = [{transform_indices = @transform_0, window_bounds = array<i64: 4, 16, 96>}, {pipeline_mode = #tpu.pipeline_mode<synchronous>, transform_indices = @transform_1, window_bounds = array<i64: 96, 384>}, {pipeline_mode = #tpu.pipeline_mode<synchronous>, transform_indices = @transform_2, window_bounds = array<i64: 1, 384>}, {pipeline_mode = #tpu.pipeline_mode<synchronous>, transform_indices = @transform_3, window_bounds = array<i64: 128, 32>}, {pipeline_mode = #tpu.pipeline_mode<synchronous>, transform_indices = @transform_4, window_bounds = array<i64: 1, 32>}, {transform_indices = @transform_5, window_bounds = array<i64: 4, 16, 32>}]} {
    %c0 = arith.constant 0 : index
    %c0_0 = arith.constant 0 : index
    %c0_1 = arith.constant 0 : index
    %0 = vector.load %arg1[%c0, %c0_0, %c0_1] : memref<4x16x96xbf16, #tpu.memory_space<vmem>>, vector<4x16x96xbf16>
    %1 = vector.shape_cast %0 : vector<4x16x96xbf16> to vector<64x96xbf16>
    %c0_2 = arith.constant 0 : index
    %c0_3 = arith.constant 0 : index
    %2 = vector.load %arg2[%c0_2, %c0_3] : memref<96x384xbf16, #tpu.memory_space<vmem>>, vector<96x384xbf16>
    %cst = arith.constant dense<0.000000e+00> : vector<64x384xf32>
    %3 = tpu.matmul %1, %2, %cst {dimension_numbers = #tpu.dot_dimension_numbers<[1], [0], [0], [1], [0, 0, 1, 1], [], []>} : vector<64x96xbf16>, vector<96x384xbf16>, vector<64x384xf32> -> vector<64x384xf32>
    %c0_4 = arith.constant 0 : index
    %c0_5 = arith.constant 0 : index
    %4 = vector.load %arg3[%c0_4, %c0_5] : memref<1x384xf32, #tpu.memory_space<vmem>>, vector<1x384xf32>
    %5 = vector.broadcast %4 : vector<1x384xf32> to vector<64x384xf32>
    %6 = arith.addf %3, %5 : vector<64x384xf32>
    %7 = arith.truncf %6 : vector<64x384xf32> to vector<64x384xbf16>
    %8 = vector.extract_strided_slice %7 {offsets = [0, 0], sizes = [64, 128], strides = [1, 1]} : vector<64x384xbf16> to vector<64x128xbf16>
    %9 = vector.shape_cast %8 : vector<64x128xbf16> to vector<4x16x128xbf16>
    %10 = vector.extract_strided_slice %7 {offsets = [0, 128], sizes = [64, 128], strides = [1, 1]} : vector<64x384xbf16> to vector<64x128xbf16>
    %11 = vector.shape_cast %10 : vector<64x128xbf16> to vector<4x16x128xbf16>
    %12 = vector.extract_strided_slice %7 {offsets = [0, 256], sizes = [64, 128], strides = [1, 1]} : vector<64x384xbf16> to vector<64x128xbf16>
    %13 = vector.shape_cast %12 : vector<64x128xbf16> to vector<4x16x128xbf16>
    %14 = vector.extract_strided_slice %9 {offsets = [0, 0, 0], sizes = [4, 16, 32], strides = [1, 1, 1]} : vector<4x16x128xbf16> to vector<4x16x32xbf16>
    %15 = vector.extract_strided_slice %11 {offsets = [0, 0, 0], sizes = [4, 16, 32], strides = [1, 1, 1]} : vector<4x16x128xbf16> to vector<4x16x32xbf16>
    %16 = vector.extract_strided_slice %13 {offsets = [0, 0, 0], sizes = [4, 16, 32], strides = [1, 1, 1]} : vector<4x16x128xbf16> to vector<4x16x32xbf16>
    "tpu.trace_start"() <{level = 10 : i32, message = "bqd,bkd->bqk"}> : () -> ()
    %cst_6 = arith.constant dense<0.000000e+00> : vector<4x16x16xf32>
    %17 = tpu.matmul %14, %15, %cst_6 {dimension_numbers = #tpu.dot_dimension_numbers<[2], [2], [1], [1], [0, 0, 0, 1, 1, 1], [0], [0]>} : vector<4x16x32xbf16>, vector<4x16x32xbf16>, vector<4x16x16xf32> -> vector<4x16x16xf32>
    "tpu.trace_stop"() : () -> ()
    %cst_7 = arith.constant dense<0xFF800000> : vector<4x16xf32>
    %18 = vector.multi_reduction <maximumf>, %17, %cst_7 [2] : vector<4x16x16xf32> to vector<4x16xf32>
    %19 = vector.shape_cast %18 : vector<4x16xf32> to vector<4x16x1xf32>
    %20 = vector.broadcast %19 : vector<4x16x1xf32> to vector<4x16x16xf32>
    %21 = arith.subf %17, %20 : vector<4x16x16xf32>
    %22 = math.exp %21 : vector<4x16x16xf32>
    %cst_8 = arith.constant dense<0.000000e+00> : vector<4x16xf32>
    %23 = vector.multi_reduction <add>, %22, %cst_8 [2] : vector<4x16x16xf32> to vector<4x16xf32>
    %24 = vector.shape_cast %23 : vector<4x16xf32> to vector<4x16x1xf32>
    %25 = tpu.reciprocal %24 {approx = true} : vector<4x16x1xf32> -> vector<4x16x1xf32>
    %26 = vector.broadcast %25 : vector<4x16x1xf32> to vector<4x16x16xf32>
    %27 = arith.mulf %22, %26 : vector<4x16x16xf32>
    %28 = arith.truncf %27 : vector<4x16x16xf32> to vector<4x16x16xbf16>
    "tpu.trace_start"() <{level = 10 : i32, message = "bqk,bkd->bqd"}> : () -> ()
    %cst_9 = arith.constant dense<0.000000e+00> : vector<4x16x32xf32>
    %29 = tpu.matmul %28, %16, %cst_9 {dimension_numbers = #tpu.dot_dimension_numbers<[2], [1], [1], [2], [0, 0, 0, 1, 1, 2], [0], [0]>} : vector<4x16x16xbf16>, vector<4x16x32xbf16>, vector<4x16x32xf32> -> vector<4x16x32xf32>
    "tpu.trace_stop"() : () -> ()
    %30 = arith.truncf %29 : vector<4x16x32xf32> to vector<4x16x32xbf16>
    %31 = vector.extract_strided_slice %9 {offsets = [0, 0, 32], sizes = [4, 16, 32], strides = [1, 1, 1]} : vector<4x16x128xbf16> to vector<4x16x32xbf16>
    %32 = vector.extract_strided_slice %11 {offsets = [0, 0, 32], sizes = [4, 16, 32], strides = [1, 1, 1]} : vector<4x16x128xbf16> to vector<4x16x32xbf16>
    %33 = vector.extract_strided_slice %13 {offsets = [0, 0, 32], sizes = [4, 16, 32], strides = [1, 1, 1]} : vector<4x16x128xbf16> to vector<4x16x32xbf16>
    "tpu.trace_start"() <{level = 10 : i32, message = "bqd,bkd->bqk"}> : () -> ()
    %cst_10 = arith.constant dense<0.000000e+00> : vector<4x16x16xf32>
    %34 = tpu.matmul %31, %32, %cst_10 {dimension_numbers = #tpu.dot_dimension_numbers<[2], [2], [1], [1], [0, 0, 0, 1, 1, 1], [0], [0]>} : vector<4x16x32xbf16>, vector<4x16x32xbf16>, vector<4x16x16xf32> -> vector<4x16x16xf32>
    "tpu.trace_stop"() : () -> ()
    %cst_11 = arith.constant dense<0xFF800000> : vector<4x16xf32>
    %35 = vector.multi_reduction <maximumf>, %34, %cst_11 [2] : vector<4x16x16xf32> to vector<4x16xf32>
    %36 = vector.shape_cast %35 : vector<4x16xf32> to vector<4x16x1xf32>
    %37 = vector.broadcast %36 : vector<4x16x1xf32> to vector<4x16x16xf32>
    %38 = arith.subf %34, %37 : vector<4x16x16xf32>
    %39 = math.exp %38 : vector<4x16x16xf32>
    %cst_12 = arith.constant dense<0.000000e+00> : vector<4x16xf32>
    %40 = vector.multi_reduction <add>, %39, %cst_12 [2] : vector<4x16x16xf32> to vector<4x16xf32>
    %41 = vector.shape_cast %40 : vector<4x16xf32> to vector<4x16x1xf32>
    %42 = tpu.reciprocal %41 {approx = true} : vector<4x16x1xf32> -> vector<4x16x1xf32>
    %43 = vector.broadcast %42 : vector<4x16x1xf32> to vector<4x16x16xf32>
    %44 = arith.mulf %39, %43 : vector<4x16x16xf32>
    %45 = arith.truncf %44 : vector<4x16x16xf32> to vector<4x16x16xbf16>
    "tpu.trace_start"() <{level = 10 : i32, message = "bqk,bkd->bqd"}> : () -> ()
    %cst_13 = arith.constant dense<0.000000e+00> : vector<4x16x32xf32>
    %46 = tpu.matmul %45, %33, %cst_13 {dimension_numbers = #tpu.dot_dimension_numbers<[2], [1], [1], [2], [0, 0, 0, 1, 1, 2], [0], [0]>} : vector<4x16x16xbf16>, vector<4x16x32xbf16>, vector<4x16x32xf32> -> vector<4x16x32xf32>
    "tpu.trace_stop"() : () -> ()
    %47 = arith.truncf %46 : vector<4x16x32xf32> to vector<4x16x32xbf16>
    %48 = vector.extract_strided_slice %9 {offsets = [0, 0, 64], sizes = [4, 16, 32], strides = [1, 1, 1]} : vector<4x16x128xbf16> to vector<4x16x32xbf16>
    %49 = vector.extract_strided_slice %11 {offsets = [0, 0, 64], sizes = [4, 16, 32], strides = [1, 1, 1]} : vector<4x16x128xbf16> to vector<4x16x32xbf16>
    %50 = vector.extract_strided_slice %13 {offsets = [0, 0, 64], sizes = [4, 16, 32], strides = [1, 1, 1]} : vector<4x16x128xbf16> to vector<4x16x32xbf16>
    "tpu.trace_start"() <{level = 10 : i32, message = "bqd,bkd->bqk"}> : () -> ()
    %cst_14 = arith.constant dense<0.000000e+00> : vector<4x16x16xf32>
    %51 = tpu.matmul %48, %49, %cst_14 {dimension_numbers = #tpu.dot_dimension_numbers<[2], [2], [1], [1], [0, 0, 0, 1, 1, 1], [0], [0]>} : vector<4x16x32xbf16>, vector<4x16x32xbf16>, vector<4x16x16xf32> -> vector<4x16x16xf32>
    "tpu.trace_stop"() : () -> ()
    %cst_15 = arith.constant dense<0xFF800000> : vector<4x16xf32>
    %52 = vector.multi_reduction <maximumf>, %51, %cst_15 [2] : vector<4x16x16xf32> to vector<4x16xf32>
    %53 = vector.shape_cast %52 : vector<4x16xf32> to vector<4x16x1xf32>
    %54 = vector.broadcast %53 : vector<4x16x1xf32> to vector<4x16x16xf32>
    %55 = arith.subf %51, %54 : vector<4x16x16xf32>
    %56 = math.exp %55 : vector<4x16x16xf32>
    %cst_16 = arith.constant dense<0.000000e+00> : vector<4x16xf32>
    %57 = vector.multi_reduction <add>, %56, %cst_16 [2] : vector<4x16x16xf32> to vector<4x16xf32>
    %58 = vector.shape_cast %57 : vector<4x16xf32> to vector<4x16x1xf32>
    %59 = tpu.reciprocal %58 {approx = true} : vector<4x16x1xf32> -> vector<4x16x1xf32>
    %60 = vector.broadcast %59 : vector<4x16x1xf32> to vector<4x16x16xf32>
    %61 = arith.mulf %56, %60 : vector<4x16x16xf32>
    %62 = arith.truncf %61 : vector<4x16x16xf32> to vector<4x16x16xbf16>
    "tpu.trace_start"() <{level = 10 : i32, message = "bqk,bkd->bqd"}> : () -> ()
    %cst_17 = arith.constant dense<0.000000e+00> : vector<4x16x32xf32>
    %63 = tpu.matmul %62, %50, %cst_17 {dimension_numbers = #tpu.dot_dimension_numbers<[2], [1], [1], [2], [0, 0, 0, 1, 1, 2], [0], [0]>} : vector<4x16x16xbf16>, vector<4x16x32xbf16>, vector<4x16x32xf32> -> vector<4x16x32xf32>
    "tpu.trace_stop"() : () -> ()
    %64 = arith.truncf %63 : vector<4x16x32xf32> to vector<4x16x32xbf16>
    %65 = vector.extract_strided_slice %9 {offsets = [0, 0, 96], sizes = [4, 16, 32], strides = [1, 1, 1]} : vector<4x16x128xbf16> to vector<4x16x32xbf16>
    %66 = vector.extract_strided_slice %11 {offsets = [0, 0, 96], sizes = [4, 16, 32], strides = [1, 1, 1]} : vector<4x16x128xbf16> to vector<4x16x32xbf16>
    %67 = vector.extract_strided_slice %13 {offsets = [0, 0, 96], sizes = [4, 16, 32], strides = [1, 1, 1]} : vector<4x16x128xbf16> to vector<4x16x32xbf16>
    "tpu.trace_start"() <{level = 10 : i32, message = "bqd,bkd->bqk"}> : () -> ()
    %cst_18 = arith.constant dense<0.000000e+00> : vector<4x16x16xf32>
    %68 = tpu.matmul %65, %66, %cst_18 {dimension_numbers = #tpu.dot_dimension_numbers<[2], [2], [1], [1], [0, 0, 0, 1, 1, 1], [0], [0]>} : vector<4x16x32xbf16>, vector<4x16x32xbf16>, vector<4x16x16xf32> -> vector<4x16x16xf32>
    "tpu.trace_stop"() : () -> ()
    %cst_19 = arith.constant dense<0xFF800000> : vector<4x16xf32>
    %69 = vector.multi_reduction <maximumf>, %68, %cst_19 [2] : vector<4x16x16xf32> to vector<4x16xf32>
    %70 = vector.shape_cast %69 : vector<4x16xf32> to vector<4x16x1xf32>
    %71 = vector.broadcast %70 : vector<4x16x1xf32> to vector<4x16x16xf32>
    %72 = arith.subf %68, %71 : vector<4x16x16xf32>
    %73 = math.exp %72 : vector<4x16x16xf32>
    %cst_20 = arith.constant dense<0.000000e+00> : vector<4x16xf32>
    %74 = vector.multi_reduction <add>, %73, %cst_20 [2] : vector<4x16x16xf32> to vector<4x16xf32>
    %75 = vector.shape_cast %74 : vector<4x16xf32> to vector<4x16x1xf32>
    %76 = tpu.reciprocal %75 {approx = true} : vector<4x16x1xf32> -> vector<4x16x1xf32>
    %77 = vector.broadcast %76 : vector<4x16x1xf32> to vector<4x16x16xf32>
    %78 = arith.mulf %73, %77 : vector<4x16x16xf32>
    %79 = arith.truncf %78 : vector<4x16x16xf32> to vector<4x16x16xbf16>
    "tpu.trace_start"() <{level = 10 : i32, message = "bqk,bkd->bqd"}> : () -> ()
    %cst_21 = arith.constant dense<0.000000e+00> : vector<4x16x32xf32>
    %80 = tpu.matmul %79, %67, %cst_21 {dimension_numbers = #tpu.dot_dimension_numbers<[2], [1], [1], [2], [0, 0, 0, 1, 1, 2], [0], [0]>} : vector<4x16x16xbf16>, vector<4x16x32xbf16>, vector<4x16x32xf32> -> vector<4x16x32xf32>
    "tpu.trace_stop"() : () -> ()
    %81 = arith.truncf %80 : vector<4x16x32xf32> to vector<4x16x32xbf16>
    %82 = tpu.concatenate %30, %47, %64, %81 in 2 : vector<4x16x32xbf16>, vector<4x16x32xbf16>, vector<4x16x32xbf16>, vector<4x16x32xbf16> -> vector<4x16x128xbf16>
    %83 = vector.shape_cast %82 : vector<4x16x128xbf16> to vector<64x128xbf16>
    %c0_22 = arith.constant 0 : index
    %c0_23 = arith.constant 0 : index
    %84 = vector.load %arg4[%c0_22, %c0_23] : memref<128x32xbf16, #tpu.memory_space<vmem>>, vector<128x32xbf16>
    %cst_24 = arith.constant dense<0.000000e+00> : vector<64x32xf32>
    %85 = tpu.matmul %83, %84, %cst_24 {dimension_numbers = #tpu.dot_dimension_numbers<[1], [0], [0], [1], [0, 0, 1, 1], [], []>} : vector<64x128xbf16>, vector<128x32xbf16>, vector<64x32xf32> -> vector<64x32xf32>
    %c0_25 = arith.constant 0 : index
    %c0_26 = arith.constant 0 : index
    %86 = vector.load %arg5[%c0_25, %c0_26] : memref<1x32xf32, #tpu.memory_space<vmem>>, vector<1x32xf32>
    %87 = vector.broadcast %86 : vector<1x32xf32> to vector<64x32xf32>
    %88 = arith.addf %85, %87 : vector<64x32xf32>
    %89 = vector.shape_cast %88 : vector<64x32xf32> to vector<4x16x32xf32>
    %c0_27 = arith.constant 0 : index
    %c0_28 = arith.constant 0 : index
    %c0_29 = arith.constant 0 : index
    %90 = vector.load %arg6[%c0_27, %c0_28, %c0_29] : memref<4x16x32xf32, #tpu.memory_space<vmem>>, vector<4x16x32xf32>
    tpu.vector_store %arg6[%c0_27, %c0_28, %c0_29], %89 {strides = array<i32>} : memref<4x16x32xf32, #tpu.memory_space<vmem>>, vector<4x16x32xf32>,
    return
  }
  func.func @transform_0(%arg0: i32) -> (i32, i32, i32) {
    %c0_i32 = arith.constant 0 : i32
    %c0_i32_0 = arith.constant 0 : i32
    %c0_i32_1 = arith.constant 0 : i32
    return %arg0, %c0_i32, %c0_i32_0 : i32, i32, i32
  }
  func.func @transform_1(%arg0: i32) -> (i32, i32) {
    %c0_i32 = arith.constant 0 : i32
    %c0_i32_0 = arith.constant 0 : i32
    %c0_i32_1 = arith.constant 0 : i32
    return %c0_i32, %c0_i32_0 : i32, i32
  }
  func.func @transform_2(%arg0: i32) -> (i32, i32) {
    %c0_i32 = arith.constant 0 : i32
    %c0_i32_0 = arith.constant 0 : i32
    %c0_i32_1 = arith.constant 0 : i32
    return %c0_i32, %c0_i32_0 : i32, i32
  }
  func.func @transform_3(%arg0: i32) -> (i32, i32) {
    %c0_i32 = arith.constant 0 : i32
    %c0_i32_0 = arith.constant 0 : i32
    %c0_i32_1 = arith.constant 0 : i32
    return %c0_i32, %c0_i32_0 : i32, i32
  }
  func.func @transform_4(%arg0: i32) -> (i32, i32) {
    %c0_i32 = arith.constant 0 : i32
    %c0_i32_0 = arith.constant 0 : i32
    %c0_i32_1 = arith.constant 0 : i32
    return %c0_i32, %c0_i32_0 : i32, i32
  }
  func.func @transform_5(%arg0: i32) -> (i32, i32, i32) {
    %c0_i32 = arith.constant 0 : i32
    %c0_i32_0 = arith.constant 0 : i32
    %c0_i32_1 = arith.constant 0 : i32
    return %arg0, %c0_i32, %c0_i32_0 : i32, i32, i32
  }
}

</mosaic_0001>

<llo_original>
// kernel: conv_attention_layer.1
$region0: #{conv_attention_layer.1}
  #allocation0 [shape = 'u32[]', space=smem, size = 0x4, offset = 0x4, fixed_abs, tag = 'smem constant byte address 0x4 - core index']
  #allocation1 [shape = 'u32[144,128]{1,0:T(1,128)}', space=vmem, size = 0x12000, scoped, tag = 'internal scratch']
  %s0 = inlined_call_operand.vmem [shape: bf16[4,16,96], index: 0, kind: input, shape index: {}]
  %s1 = inlined_call_operand.vmem [shape: bf16[96,384], index: 1, kind: input, shape index: {}]
  %s2 = inlined_call_operand.vmem [shape: f32[1,384], index: 2, kind: input, shape index: {}]
  %s3 = inlined_call_operand.vmem [shape: bf16[128,32], index: 3, kind: input, shape index: {}]
  %s4 = inlined_call_operand.vmem [shape: f32[1,32], index: 4, kind: input, shape index: {}]
  %s5 = inlined_call_operand.hbm [shape: f32[4,16,32], index: 5, kind: output, shape index: {}]
  %s6 = sld [smem:[#allocation0]]
  $region30: #{conv_attention_layer.1} parent=0
    _
  %s8 = ssub.s32 1, %s6
  %s9 = scalar_select 0, %s8, %s6
  $region1: #{conv_attention_layer.1} parent=0
    #allocation2 [shape = 'u8[32768]{0}', space=vmem, size = 0x8000, scoped, tag = 'output window, operand 0, single buffered']
    #allocation3 [shape = 's32[1]{0}', space=sflag, size = 0x4, scoped, tag = 'scoped memory for conv_attention_layer.1']
    %10 = vsyncpa [#allocation3], 0
    // Predicated region
    $region2: #{conv_attention_layer.1} parent=1 // pred_check
      _
    $region3: #{conv_attention_layer.1} parent=1 // pred_check_branch
      %12 = sbr.rel (0) target = $region5
    $region4: #{conv_attention_layer.1} parent=1 // pred_region
      _
    $region5: #{conv_attention_layer.1} parent=1 // pred_fallthru
      _
    // Predicated region
    $region6: #{conv_attention_layer.1} parent=1 // pred_check
      _
    $region7: #{conv_attention_layer.1} parent=1 // pred_check_branch
      %14 = sbr.rel (0) target = $region9
    $region8: #{conv_attention_layer.1} parent=1 // pred_region
      _
    $region9: #{conv_attention_layer.1} parent=1 // pred_fallthru
      _
    // Predicated region
    $region10: #{conv_attention_layer.1} parent=1 // pred_check
      _
    $region11: #{conv_attention_layer.1} parent=1 // pred_check_branch
      %16 = sbr.rel (0) target = $region13
    $region12: #{conv_attention_layer.1} parent=1 // pred_region
      _
    $region13: #{conv_attention_layer.1} parent=1 // pred_fallthru
      _
    // Predicated region
    $region14: #{conv_attention_layer.1} parent=1 // pred_check
      _
    $region15: #{conv_attention_layer.1} parent=1 // pred_check_branch
      %18 = sbr.rel (0) target = $region17
    $region16: #{conv_attention_layer.1} parent=1 // pred_region
      _
    $region17: #{conv_attention_layer.1} parent=1 // pred_fallthru
      _
    // Predicated region
    $region18: #{conv_attention_layer.1} parent=1 // pred_check
      _
    $region19: #{conv_attention_layer.1} parent=1 // pred_check_branch
      %20 = sbr.rel (0) target = $region21
    $region20: #{conv_attention_layer.1} parent=1 // pred_region
      _
    $region21: #{conv_attention_layer.1} parent=1 // pred_fallthru
      _
    %v22 = vld [vmem:[%s0] sm:$0xf]
    %v23 = vld [vmem:[%s0 + $0x4] sm:$0xf]
    %v24 = vld [vmem:[%s0 + $0x8] sm:$0xf]
    %v25 = vld [vmem:[%s0 + $0xc] sm:$0xf]
    %v26 = vld [vmem:[%s0 + $0x10] sm:$0xf]
    %v27 = vld [vmem:[%s0 + $0x14] sm:$0xf]
    %v28 = vld [vmem:[%s0 + $0x18] sm:$0xf]
    %v29 = vld [vmem:[%s0 + $0x1c] sm:$0xf]
    %v30 = vld [vmem:[%s1] sm:$0xff]
    %v31 = vld [vmem:[%s1 + $0x8] sm:$0xf]
    %v32 = vld [vmem:[%s1 + $0xc] sm:$0xff]
    %v33 = vld [vmem:[%s1 + $0x14] sm:$0xf]
    %v34 = vld [vmem:[%s1 + $0x18] sm:$0xff]
    %v35 = vld [vmem:[%s1 + $0x20] sm:$0xf]
    %v36 = vld [vmem:[%s1 + $0x24] sm:$0xff]
    %v37 = vld [vmem:[%s1 + $0x2c] sm:$0xf]
    %v38 = vld [vmem:[%s1 + $0x30] sm:$0xff]
    %v39 = vld [vmem:[%s1 + $0x38] sm:$0xf]
    %v40 = vld [vmem:[%s1 + $0x3c] sm:$0xff]
    %v41 = vld [vmem:[%s1 + $0x44] sm:$0xf]
    %v42 = vld [vmem:[%s1 + $0x48] sm:$0xff]
    %v43 = vld [vmem:[%s1 + $0x50] sm:$0xf]
    %v44 = vld [vmem:[%s1 + $0x54] sm:$0xff]
    %v45 = vld [vmem:[%s1 + $0x5c] sm:$0xf]
    %v46 = vld [vmem:[%s1 + $0x60] sm:$0xff]
    %v47 = vld [vmem:[%s1 + $0x68] sm:$0xf]
    %v48 = vld [vmem:[%s1 + $0x6c] sm:$0xff]
    %v49 = vld [vmem:[%s1 + $0x74] sm:$0xf]
    %v50 = vld [vmem:[%s1 + $0x78] sm:$0xff]
    %v51 = vld [vmem:[%s1 + $0x80] sm:$0xf]
    %v52 = vld [vmem:[%s1 + $0x84] sm:$0xff]
    %v53 = vld [vmem:[%s1 + $0x8c] sm:$0xf]
    %v54 = vld [vmem:[%s2] sm:$0x7]
    %v56 = vlaneseq
    %v57 = vshrl.u32 %v56, 7
    %v58 = vsub.s32 0, %v57
    %v59 = vrot.slane %v54, %v58
    %v60 = vlaneseq
    %v61 = vshrl.u32 %v60, 7
    %v62 = vsub.s32 1, %v61
    %v63 = vrot.slane %v54, %v62
    %v64 = vlaneseq
    %v65 = vshrl.u32 %v64, 7
    %v66 = vsub.s32 2, %v65
    %v67 = vrot.slane %v54, %v66
    %v79 = vunpack.c.l.b16 %v22
    %v80 = vunpack.c.l.b16 %v23
    %v81 = vunpack.c.l.b16 %v24
    %v82 = vunpack.c.l.b16 %v25
    %v83 = vunpack.c.l.b16 %v26
    %v84 = vunpack.c.l.b16 %v27
    %v85 = vunpack.c.l.b16 %v28
    %v86 = vunpack.c.l.b16 %v29
    %v87 = vpack.c.b16 %v80, %v79
    %v88 = vpack.c.b16 %v82, %v81
    %v89 = vpack.c.b16 %v84, %v83
    %v90 = vpack.c.b16 %v86, %v85
    %v115 = vunpack.c.l.b16 %v30
    %v116 = vunpack.c.h.b16 %v30
    %v117 = vunpack.c.l.b16 %v31
    %v118 = vunpack.c.l.b16 %v32
    %v119 = vunpack.c.h.b16 %v32
    %v120 = vunpack.c.l.b16 %v33
    %v121 = vunpack.c.l.b16 %v34
    %v122 = vunpack.c.h.b16 %v34
    %v123 = vunpack.c.l.b16 %v35
    %v124 = vunpack.c.l.b16 %v36
    %v125 = vunpack.c.h.b16 %v36
    %v126 = vunpack.c.l.b16 %v37
    %v127 = vunpack.c.l.b16 %v38
    %v128 = vunpack.c.h.b16 %v38
    %v129 = vunpack.c.l.b16 %v39
    %v130 = vunpack.c.l.b16 %v40
    %v131 = vunpack.c.h.b16 %v40
    %v132 = vunpack.c.l.b16 %v41
    %v133 = vunpack.c.l.b16 %v42
    %v134 = vunpack.c.h.b16 %v42
    %v135 = vunpack.c.l.b16 %v43
    %v136 = vunpack.c.l.b16 %v44
    %v137 = vunpack.c.h.b16 %v44
    %v138 = vunpack.c.l.b16 %v45
    %v139 = vunpack.c.l.b16 %v46
    %v140 = vunpack.c.h.b16 %v46
    %v141 = vunpack.c.l.b16 %v47
    %v142 = vunpack.c.l.b16 %v48
    %v143 = vunpack.c.h.b16 %v48
    %v144 = vunpack.c.l.b16 %v49
    %v145 = vunpack.c.l.b16 %v50
    %v146 = vunpack.c.h.b16 %v50
    %v147 = vunpack.c.l.b16 %v51
    %v148 = vunpack.c.l.b16 %v52
    %v149 = vunpack.c.h.b16 %v52
    %v150 = vunpack.c.l.b16 %v53
    %v151 = vpack.c.b16 %v118, %v115
    %v152 = vpack.c.b16 %v119, %v116
    %v153 = vpack.c.b16 %v120, %v117
    %v154 = vpack.c.b16 %v124, %v121
    %v155 = vpack.c.b16 %v125, %v122
    %v156 = vpack.c.b16 %v126, %v123
    %v157 = vpack.c.b16 %v130, %v127
    %v158 = vpack.c.b16 %v131, %v128
    %v159 = vpack.c.b16 %v132, %v129
    %v160 = vpack.c.b16 %v136, %v133
    %v161 = vpack.c.b16 %v137, %v134
    %v162 = vpack.c.b16 %v138, %v135
    %v163 = vpack.c.b16 %v142, %v139
    %v164 = vpack.c.b16 %v143, %v140
    %v165 = vpack.c.b16 %v144, %v141
    %v166 = vpack.c.b16 %v148, %v145
    %v167 = vpack.c.b16 %v149, %v146
    %v168 = vpack.c.b16 %v150, %v147
    %vm187 = vcmask 785408
    %v189 = vsel %vm187, %v87, 0
    %v192 = vsel %vm187, %v88, 0
    %v195 = vsel %vm187, %v89, 0
    %v198 = vsel %vm187, %v90, 0
    %200 = vmatprep.subr.bf16.mxu0 %v152
    %201 = vmatpush1.bf16.msra.mxu0 %v151
    %202 = vmatprep.subr.bf16.mxu0 %v155
    %203 = vmatpush1.bf16.msra.mxu0 %v154
    %204 = vmatprep.subr.bf16.mxu0 %v158
    %205 = vmatpush1.bf16.msra.mxu0 %v157
    %206 = vmatprep.subr.bf16.mxu0 %v161
    %207 = vmatpush1.bf16.msra.mxu0 %v160
    %208 = vmatprep.subr.bf16.mxu0 %v164
    %209 = vmatpush1.bf16.msra.mxu0 %v163
    %210 = vmatprep.subr.bf16.mxu0 %v167
    %211 = vmatpush1.bf16.msra.mxu0 %v166
    %212 = vmatprep.subr.bf16.mxu0 0
    %213 = vmatpush1.bf16.msra.mxu0 0
    %214 = vmatprep.subr.bf16.mxu0 0
    %215 = vmatpush1.bf16.msra.mxu0 0
    %216 = vmatprep.subr.bf16.mxu0 0
    %217 = vmatpush1.bf16.msra.mxu0 0
    %218 = vmatprep.subr.bf16.mxu0 0
    %219 = vmatpush1.bf16.msra.mxu0 0
    %220 = vmatprep.subr.bf16.mxu0 0
    %221 = vmatpush1.bf16.msra.mxu0 0
    %222 = vmatprep.subr.bf16.mxu0 0
    %223 = vmatpush1.bf16.msra.mxu0 0
    %224 = vmatprep.subr.bf16.mxu0 0
    %225 = vmatpush1.bf16.msra.mxu0 0
    %226 = vmatprep.subr.bf16.mxu0 0
    %227 = vmatpush1.bf16.msra.mxu0 0
    %228 = vmatprep.subr.bf16.mxu0 0
    %229 = vmatpush1.bf16.msra.mxu0 0
    %230 = vmatprep.subr.bf16.mxu0 0
    %231 = vmatpush1.bf16.msra.mxu0 0
    %232 = vmatprep.mubr.bf16.mxu0 0
    %233 = vmatmul.mubr.bf16.gmra.mrb[0].mxu0 %v189
    %v234 = vpop.f32.mrb[0].mxu0
    %v235 = vadd.f32 %v59, %v234
    %v236 = vpop.f32.mrb[0].mxu0
    %v237 = vadd.f32 %v63, %v236
    %v238 = vpop.f32.mrb[0].mxu0
    %v239 = vadd.f32 %v59, %v238
    %v240 = vpop.f32.mrb[0].mxu0
    %v241 = vadd.f32 %v63, %v240
    %242 = vmatprep.mubr.bf16.mxu0 0
    %243 = vmatmul.mubr.bf16.gmra.mrb[0].mxu0 %v192
    %v244 = vpop.f32.mrb[0].mxu0
    %v245 = vadd.f32 %v59, %v244
    %v246 = vpop.f32.mrb[0].mxu0
    %v247 = vadd.f32 %v63, %v246
    %v248 = vpop.f32.mrb[0].mxu0
    %v249 = vadd.f32 %v59, %v248
    %v250 = vpop.f32.mrb[0].mxu0
    %v251 = vadd.f32 %v63, %v250
    %252 = vmatprep.mubr.bf16.mxu0 0
    %253 = vmatmul.mubr.bf16.gmra.mrb[0].mxu0 %v195
    %v254 = vpop.f32.mrb[0].mxu0
    %v255 = vadd.f32 %v59, %v254
    %v256 = vpop.f32.mrb[0].mxu0
    %v257 = vadd.f32 %v63, %v256
    %v258 = vpop.f32.mrb[0].mxu0
    %v259 = vadd.f32 %v59, %v258
    %v260 = vpop.f32.mrb[0].mxu0
    %v261 = vadd.f32 %v63, %v260
    %262 = vmatprep.mubr.bf16.mxu0 0
    %263 = vmatmul.mubr.bf16.gmra.mrb[0].mxu0 %v198
    %v264 = vpop.f32.mrb[0].mxu0
    %v265 = vadd.f32 %v59, %v264
    %v266 = vpop.f32.mrb[0].mxu0
    %v267 = vadd.f32 %v63, %v266
    %v268 = vpop.f32.mrb[0].mxu0
    %v269 = vadd.f32 %v59, %v268
    %v270 = vpop.f32.mrb[0].mxu0
    %v271 = vadd.f32 %v63, %v270
    %272 = vdwg.mxu0
    %273 = vmatprep.subr.bf16.mxu0 0
    %274 = vmatpush1.bf16.msra.mxu0 %v153
    %275 = vmatprep.subr.bf16.mxu0 0
    %276 = vmatpush1.bf16.msra.mxu0 %v156
    %277 = vmatprep.subr.bf16.mxu0 0
    %278 = vmatpush1.bf16.msra.mxu0 %v159
    %279 = vmatprep.subr.bf16.mxu0 0
    %280 = vmatpush1.bf16.msra.mxu0 %v162
    %281 = vmatprep.subr.bf16.mxu0 0
    %282 = vmatpush1.bf16.msra.mxu0 %v165
    %283 = vmatprep.subr.bf16.mxu0 0
    %284 = vmatpush1.bf16.msra.mxu0 %v168
    %285 = vmatprep.subr.bf16.mxu0 0
    %286 = vmatpush1.bf16.msra.mxu0 0
    %287 = vmatprep.subr.bf16.mxu0 0
    %288 = vmatpush1.bf16.msra.mxu0 0
    %289 = vmatprep.subr.bf16.mxu0 0
    %290 = vmatpush1.bf16.msra.mxu0 0
    %291 = vmatprep.subr.bf16.mxu0 0
    %292 = vmatpush1.bf16.msra.mxu0 0
    %293 = vmatprep.subr.bf16.mxu0 0
    %294 = vmatpush1.bf16.msra.mxu0 0
    %295 = vmatprep.subr.bf16.mxu0 0
    %296 = vmatpush1.bf16.msra.mxu0 0
    %297 = vmatprep.subr.bf16.mxu0 0
    %298 = vmatpush1.bf16.msra.mxu0 0
    %299 = vmatprep.subr.bf16.mxu0 0
    %300 = vmatpush1.bf16.msra.mxu0 0
    %301 = vmatprep.subr.bf16.mxu0 0
    %302 = vmatpush1.bf16.msra.mxu0 0
    %303 = vmatprep.subr.bf16.mxu0 0
    %304 = vmatpush1.bf16.msra.mxu0 0
    %305 = vmatprep.mubr.bf16.mxu0 0
    %306 = vmatmul.mubr.bf16.gmra.mrb[0].mxu0 %v189
    %v307 = vpop.f32.mrb[0].mxu0
    %v308 = vadd.f32 %v67, %v307
    %v309 = vpop.f32.mrb[0].mxu0
    %v310 = vpop.f32.mrb[0].mxu0
    %v311 = vadd.f32 %v67, %v310
    %v312 = vpop.f32.mrb[0].mxu0
    %313 = vmatprep.mubr.bf16.mxu0 0
    %314 = vmatmul.mubr.bf16.gmra.mrb[0].mxu0 %v192
    %v315 = vpop.f32.mrb[0].mxu0
    %v316 = vadd.f32 %v67, %v315
    %v317 = vpop.f32.mrb[0].mxu0
    %v318 = vpop.f32.mrb[0].mxu0
    %v319 = vadd.f32 %v67, %v318
    %v320 = vpop.f32.mrb[0].mxu0
    %321 = vmatprep.mubr.bf16.mxu0 0
    %322 = vmatmul.mubr.bf16.gmra.mrb[0].mxu0 %v195
    %v323 = vpop.f32.mrb[0].mxu0
    %v324 = vadd.f32 %v67, %v323
    %v325 = vpop.f32.mrb[0].mxu0
    %v326 = vpop.f32.mrb[0].mxu0
    %v327 = vadd.f32 %v67, %v326
    %v328 = vpop.f32.mrb[0].mxu0
    %329 = vmatprep.mubr.bf16.mxu0 0
    %330 = vmatmul.mubr.bf16.gmra.mrb[0].mxu0 %v198
    %v331 = vpop.f32.mrb[0].mxu0
    %v332 = vadd.f32 %v67, %v331
    %v333 = vpop.f32.mrb[0].mxu0
    %v334 = vpop.f32.mrb[0].mxu0
    %v335 = vadd.f32 %v67, %v334
    %v336 = vpop.f32.mrb[0].mxu0
    %337 = vdwg.mxu0
    %v338 = vpack.c.bf16 %v239, %v235
    %v339 = vpack.c.bf16 %v241, %v237
    %v340 = vpack.c.bf16 %v311, %v308
    %v341 = vpack.c.bf16 %v249, %v245
    %v342 = vpack.c.bf16 %v251, %v247
    %v343 = vpack.c.bf16 %v319, %v316
    %v344 = vpack.c.bf16 %v259, %v255
    %v345 = vpack.c.bf16 %v261, %v257
    %v346 = vpack.c.bf16 %v327, %v324
    %v347 = vpack.c.bf16 %v269, %v265
    %v348 = vpack.c.bf16 %v271, %v267
    %v349 = vpack.c.bf16 %v335, %v332
    %vm350 = vcmask 261120
    %v352 = vsel %vm350, %v338, 0
    %v355 = vsel %vm350, %v339, 0
    %357 = vmatprep.subr.bf16.mxu0 0
    %358 = vmatpush1.bf16.xpose.msra.mxu0 %v355
    %359 = vmatprep.subr.bf16.mxu0 0
    %360 = vmatpush1.bf16.xpose.msra.mxu0 0
    %361 = vmatprep.subr.bf16.mxu0 0
    %362 = vmatpush1.bf16.xpose.msra.mxu0 0
    %363 = vmatprep.subr.bf16.mxu0 0
    %364 = vmatpush1.bf16.xpose.msra.mxu0 0
    %365 = vmatprep.subr.bf16.mxu0 0
    %366 = vmatpush1.bf16.xpose.msra.mxu0 0
    %367 = vmatprep.subr.bf16.mxu0 0
    %368 = vmatpush1.bf16.xpose.msra.mxu0 0
    %369 = vmatprep.subr.bf16.mxu0 0
    %370 = vmatpush1.bf16.xpose.msra.mxu0 0
    %371 = vmatprep.subr.bf16.mxu0 0
    %372 = vmatpush1.bf16.xpose.msra.mxu0 0
    %373 = vmatprep.subr.bf16.mxu0 0
    %374 = vmatpush1.bf16.xpose.msra.mxu0 0
    %375 = vmatprep.subr.bf16.mxu0 0
    %376 = vmatpush1.bf16.xpose.msra.mxu0 0
    %377 = vmatprep.subr.bf16.mxu0 0
    %378 = vmatpush1.bf16.xpose.msra.mxu0 0
    %379 = vmatprep.subr.bf16.mxu0 0
    %380 = vmatpush1.bf16.xpose.msra.mxu0 0
    %381 = vmatprep.subr.bf16.mxu0 0
    %382 = vmatpush1.bf16.xpose.msra.mxu0 0
    %383 = vmatprep.subr.bf16.mxu0 0
    %384 = vmatpush1.bf16.xpose.msra.mxu0 0
    %385 = vmatprep.subr.bf16.mxu0 0
    %386 = vmatpush1.bf16.xpose.msra.mxu0 0
    %387 = vmatprep.subr.bf16.mxu0 0
    %388 = vmatpush1.bf16.xpose.msra.mxu0 0
    %389 = vmatprep.mubr.bf16.mxu0 0
    %390 = vmatmul.mubr.bf16.gmra.mrb[0].mxu0 %v352
    %v391 = vpop.f32.mrb[0].mxu0
    %v392 = vadd.f32 0.0, %v391
    %v393 = vpop.f32.mrb[0].mxu0
    %v394 = vpop.f32.mrb[0].mxu0
    %v395 = vadd.f32 0.0, %v394
    %v396 = vpop.f32.mrb[0].mxu0
    %397 = vdwg.mxu0
    %v399 = vsel %vm350, %v341, 0
    %v402 = vsel %vm350, %v342, 0
    %404 = vmatprep.subr.bf16.mxu0 0
    %405 = vmatpush1.bf16.xpose.msra.mxu0 %v402
    %406 = vmatprep.subr.bf16.mxu0 0
    %407 = vmatpush1.bf16.xpose.msra.mxu0 0
    %408 = vmatprep.subr.bf16.mxu0 0
    %409 = vmatpush1.bf16.xpose.msra.mxu0 0
    %410 = vmatprep.subr.bf16.mxu0 0
    %411 = vmatpush1.bf16.xpose.msra.mxu0 0
    %412 = vmatprep.subr.bf16.mxu0 0
    %413 = vmatpush1.bf16.xpose.msra.mxu0 0
    %414 = vmatprep.subr.bf16.mxu0 0
    %415 = vmatpush1.bf16.xpose.msra.mxu0 0
    %416 = vmatprep.subr.bf16.mxu0 0
    %417 = vmatpush1.bf16.xpose.msra.mxu0 0
    %418 = vmatprep.subr.bf16.mxu0 0
    %419 = vmatpush1.bf16.xpose.msra.mxu0 0
    %420 = vmatprep.subr.bf16.mxu0 0
    %421 = vmatpush1.bf16.xpose.msra.mxu0 0
    %422 = vmatprep.subr.bf16.mxu0 0
    %423 = vmatpush1.bf16.xpose.msra.mxu0 0
    %424 = vmatprep.subr.bf16.mxu0 0
    %425 = vmatpush1.bf16.xpose.msra.mxu0 0
    %426 = vmatprep.subr.bf16.mxu0 0
    %427 = vmatpush1.bf16.xpose.msra.mxu0 0
    %428 = vmatprep.subr.bf16.mxu0 0
    %429 = vmatpush1.bf16.xpose.msra.mxu0 0
    %430 = vmatprep.subr.bf16.mxu0 0
    %431 = vmatpush1.bf16.xpose.msra.mxu0 0
    %432 = vmatprep.subr.bf16.mxu0 0
    %433 = vmatpush1.bf16.xpose.msra.mxu0 0
    %434 = vmatprep.subr.bf16.mxu0 0
    %435 = vmatpush1.bf16.xpose.msra.mxu0 0
    %436 = vmatprep.mubr.bf16.mxu0 0
    %437 = vmatmul.mubr.bf16.gmra.mrb[0].mxu0 %v399
    %v438 = vpop.f32.mrb[0].mxu0
    %v439 = vadd.f32 0.0, %v438
    %v440 = vpop.f32.mrb[0].mxu0
    %v441 = vpop.f32.mrb[0].mxu0
    %v442 = vadd.f32 0.0, %v441
    %v443 = vpop.f32.mrb[0].mxu0
    %444 = vdwg.mxu0
    %v446 = vsel %vm350, %v344, 0
    %v449 = vsel %vm350, %v345, 0
    %451 = vmatprep.subr.bf16.mxu0 0
    %452 = vmatpush1.bf16.xpose.msra.mxu0 %v449
    %453 = vmatprep.subr.bf16.mxu0 0
    %454 = vmatpush1.bf16.xpose.msra.mxu0 0
    %455 = vmatprep.subr.bf16.mxu0 0
    %456 = vmatpush1.bf16.xpose.msra.mxu0 0
    %457 = vmatprep.subr.bf16.mxu0 0
    %458 = vmatpush1.bf16.xpose.msra.mxu0 0
    %459 = vmatprep.subr.bf16.mxu0 0
    %460 = vmatpush1.bf16.xpose.msra.mxu0 0
    %461 = vmatprep.subr.bf16.mxu0 0
    %462 = vmatpush1.bf16.xpose.msra.mxu0 0
    %463 = vmatprep.subr.bf16.mxu0 0
    %464 = vmatpush1.bf16.xpose.msra.mxu0 0
    %465 = vmatprep.subr.bf16.mxu0 0
    %466 = vmatpush1.bf16.xpose.msra.mxu0 0
    %467 = vmatprep.subr.bf16.mxu0 0
    %468 = vmatpush1.bf16.xpose.msra.mxu0 0
    %469 = vmatprep.subr.bf16.mxu0 0
    %470 = vmatpush1.bf16.xpose.msra.mxu0 0
    %471 = vmatprep.subr.bf16.mxu0 0
    %472 = vmatpush1.bf16.xpose.msra.mxu0 0
    %473 = vmatprep.subr.bf16.mxu0 0
    %474 = vmatpush1.bf16.xpose.msra.mxu0 0
    %475 = vmatprep.subr.bf16.mxu0 0
    %476 = vmatpush1.bf16.xpose.msra.mxu0 0
    %477 = vmatprep.subr.bf16.mxu0 0
    %478 = vmatpush1.bf16.xpose.msra.mxu0 0
    %479 = vmatprep.subr.bf16.mxu0 0
    %480 = vmatpush1.bf16.xpose.msra.mxu0 0
    %481 = vmatprep.subr.bf16.mxu0 0
    %482 = vmatpush1.bf16.xpose.msra.mxu0 0
    %483 = vmatprep.mubr.bf16.mxu0 0
    %484 = vmatmul.mubr.bf16.gmra.mrb[0].mxu0 %v446
    %v485 = vpop.f32.mrb[0].mxu0
    %v486 = vadd.f32 0.0, %v485
    %v487 = vpop.f32.mrb[0].mxu0
    %v488 = vpop.f32.mrb[0].mxu0
    %v489 = vadd.f32 0.0, %v488
    %v490 = vpop.f32.mrb[0].mxu0
    %491 = vdwg.mxu0
    %v493 = vsel %vm350, %v347, 0
    %v496 = vsel %vm350, %v348, 0
    %498 = vmatprep.subr.bf16.mxu0 0
    %499 = vmatpush1.bf16.xpose.msra.mxu0 %v496
    %500 = vmatprep.subr.bf16.mxu0 0
    %501 = vmatpush1.bf16.xpose.msra.mxu0 0
    %502 = vmatprep.subr.bf16.mxu0 0
    %503 = vmatpush1.bf16.xpose.msra.mxu0 0
    %504 = vmatprep.subr.bf16.mxu0 0
    %505 = vmatpush1.bf16.xpose.msra.mxu0 0
    %506 = vmatprep.subr.bf16.mxu0 0
    %507 = vmatpush1.bf16.xpose.msra.mxu0 0
    %508 = vmatprep.subr.bf16.mxu0 0
    %509 = vmatpush1.bf16.xpose.msra.mxu0 0
    %510 = vmatprep.subr.bf16.mxu0 0
    %511 = vmatpush1.bf16.xpose.msra.mxu0 0
    %512 = vmatprep.subr.bf16.mxu0 0
    %513 = vmatpush1.bf16.xpose.msra.mxu0 0
    %514 = vmatprep.subr.bf16.mxu0 0
    %515 = vmatpush1.bf16.xpose.msra.mxu0 0
    %516 = vmatprep.subr.bf16.mxu0 0
    %517 = vmatpush1.bf16.xpose.msra.mxu0 0
    %518 = vmatprep.subr.bf16.mxu0 0
    %519 = vmatpush1.bf16.xpose.msra.mxu0 0
    %520 = vmatprep.subr.bf16.mxu0 0
    %521 = vmatpush1.bf16.xpose.msra.mxu0 0
    %522 = vmatprep.subr.bf16.mxu0 0
    %523 = vmatpush1.bf16.xpose.msra.mxu0 0
    %524 = vmatprep.subr.bf16.mxu0 0
    %525 = vmatpush1.bf16.xpose.msra.mxu0 0
    %526 = vmatprep.subr.bf16.mxu0 0
    %527 = vmatpush1.bf16.xpose.msra.mxu0 0
    %528 = vmatprep.subr.bf16.mxu0 0
    %529 = vmatpush1.bf16.xpose.msra.mxu0 0
    %530 = vmatprep.mubr.bf16.mxu0 0
    %531 = vmatmul.mubr.bf16.gmra.mrb[0].mxu0 %v493
    %v532 = vpop.f32.mrb[0].mxu0
    %v533 = vadd.f32 0.0, %v532
    %v534 = vpop.f32.mrb[0].mxu0
    %v535 = vpop.f32.mrb[0].mxu0
    %v536 = vadd.f32 0.0, %v535
    %v537 = vpop.f32.mrb[0].mxu0
    %538 = vdwg.mxu0
    %vm539 = vcmask 130048
    %v540 = vsel %vm539, %v392, -inf
    %541 = vmax.xlane.f32.xlu0 %v540
    %v542 = vpop.xlane.xlu0 %541
    %v543 = vsel %vm539, %v395, -inf
    %544 = vmax.xlane.f32.xlu0 %v543
    %v545 = vpop.xlane.xlu0 %544
    %v546 = vsel %vm539, %v439, -inf
    %547 = vmax.xlane.f32.xlu0 %v546
    %v548 = vpop.xlane.xlu0 %547
    %v549 = vsel %vm539, %v442, -inf
    %550 = vmax.xlane.f32.xlu0 %v549
    %v551 = vpop.xlane.xlu0 %550
    %v552 = vsel %vm539, %v486, -inf
    %553 = vmax.xlane.f32.xlu0 %v552
    %v554 = vpop.xlane.xlu0 %553
    %v555 = vsel %vm539, %v489, -inf
    %556 = vmax.xlane.f32.xlu0 %v555
    %v557 = vpop.xlane.xlu0 %556
    %v558 = vsel %vm539, %v533, -inf
    %559 = vmax.xlane.f32.xlu0 %v558
    %v560 = vpop.xlane.xlu0 %559
    %v561 = vsel %vm539, %v536, -inf
    %562 = vmax.xlane.f32.xlu0 %v561
    %v563 = vpop.xlane.xlu0 %562
    %v564 = vsub.f32 %v392, %v542
    %v565 = vsub.f32 %v395, %v545
    %v566 = vsub.f32 %v439, %v548
    %v567 = vsub.f32 %v442, %v551
    %v568 = vsub.f32 %v486, %v554
    %v569 = vsub.f32 %v489, %v557
    %v570 = vsub.f32 %v533, %v560
    %v571 = vsub.f32 %v536, %v563
    %v572 = vmul.f32 %v564, 1.442695
    %v573 = vpow.pop %v572
    %v574 = vmul.f32 %v565, 1.442695
    %v575 = vpow.pop %v574
    %v576 = vmul.f32 %v566, 1.442695
    %v577 = vpow.pop %v576
    %v578 = vmul.f32 %v567, 1.442695
    %v579 = vpow.pop %v578
    %v580 = vmul.f32 %v568, 1.442695
    %v581 = vpow.pop %v580
    %v582 = vmul.f32 %v569, 1.442695
    %v583 = vpow.pop %v582
    %v584 = vmul.f32 %v570, 1.442695
    %v585 = vpow.pop %v584
    %v586 = vmul.f32 %v571, 1.442695
    %v587 = vpow.pop %v586
    %v588 = vsel %vm539, %v573, 0.0
    %589 = vadd.xlane.f32.xlu0 %v588
    %v590 = vpop.xlane.xlu0 %589
    %v591 = vsel %vm539, %v575, 0.0
    %592 = vadd.xlane.f32.xlu0 %v591
    %v593 = vpop.xlane.xlu0 %592
    %v594 = vsel %vm539, %v577, 0.0
    %595 = vadd.xlane.f32.xlu0 %v594
    %v596 = vpop.xlane.xlu0 %595
    %v597 = vsel %vm539, %v579, 0.0
    %598 = vadd.xlane.f32.xlu0 %v597
    %v599 = vpop.xlane.xlu0 %598
    %v600 = vsel %vm539, %v581, 0.0
    %601 = vadd.xlane.f32.xlu0 %v600
    %v602 = vpop.xlane.xlu0 %601
    %v603 = vsel %vm539, %v583, 0.0
    %604 = vadd.xlane.f32.xlu0 %v603
    %v605 = vpop.xlane.xlu0 %604
    %v606 = vsel %vm539, %v585, 0.0
    %607 = vadd.xlane.f32.xlu0 %v606
    %v608 = vpop.xlane.xlu0 %607
    %v609 = vsel %vm539, %v587, 0.0
    %610 = vadd.xlane.f32.xlu0 %v609
    %v611 = vpop.xlane.xlu0 %610
    %v612 = vrcp.pop %v590
    %v613 = vrcp.pop %v593
    %v614 = vrcp.pop %v596
    %v615 = vrcp.pop %v599
    %v616 = vrcp.pop %v602
    %v617 = vrcp.pop %v605
    %v618 = vrcp.pop %v608
    %v619 = vrcp.pop %v611
    %v620 = vmul.f32 %v573, %v612
    %v621 = vmul.f32 %v575, %v613
    %v622 = vmul.f32 %v577, %v614
    %v623 = vmul.f32 %v579, %v615
    %v624 = vmul.f32 %v581, %v616
    %v625 = vmul.f32 %v583, %v617
    %v626 = vmul.f32 %v585, %v618
    %v627 = vmul.f32 %v587, %v619
    %v628 = vpack.c.bf16 %v621, %v620
    %v629 = vpack.c.bf16 %v623, %v622
    %v630 = vpack.c.bf16 %v625, %v624
    %v631 = vpack.c.bf16 %v627, %v626
    %v633 = vsel %vm539, %v628, 0
    %635 = vmatprep.subr.bf16.mxu0 0
    %636 = vmatpush1.bf16.msra.mxu0 %v340
    %637 = vmatprep.subr.bf16.mxu0 0
    %638 = vmatpush1.bf16.msra.mxu0 0
    %639 = vmatprep.subr.bf16.mxu0 0
    %640 = vmatpush1.bf16.msra.mxu0 0
    %641 = vmatprep.subr.bf16.mxu0 0
    %642 = vmatpush1.bf16.msra.mxu0 0
    %643 = vmatprep.subr.bf16.mxu0 0
    %644 = vmatpush1.bf16.msra.mxu0 0
    %645 = vmatprep.subr.bf16.mxu0 0
    %646 = vmatpush1.bf16.msra.mxu0 0
    %647 = vmatprep.subr.bf16.mxu0 0
    %648 = vmatpush1.bf16.msra.mxu0 0
    %649 = vmatprep.subr.bf16.mxu0 0
    %650 = vmatpush1.bf16.msra.mxu0 0
    %651 = vmatprep.subr.bf16.mxu0 0
    %652 = vmatpush1.bf16.msra.mxu0 0
    %653 = vmatprep.subr.bf16.mxu0 0
    %654 = vmatpush1.bf16.msra.mxu0 0
    %655 = vmatprep.subr.bf16.mxu0 0
    %656 = vmatpush1.bf16.msra.mxu0 0
    %657 = vmatprep.subr.bf16.mxu0 0
    %658 = vmatpush1.bf16.msra.mxu0 0
    %659 = vmatprep.subr.bf16.mxu0 0
    %660 = vmatpush1.bf16.msra.mxu0 0
    %661 = vmatprep.subr.bf16.mxu0 0
    %662 = vmatpush1.bf16.msra.mxu0 0
    %663 = vmatprep.subr.bf16.mxu0 0
    %664 = vmatpush1.bf16.msra.mxu0 0
    %665 = vmatprep.subr.bf16.mxu0 0
    %666 = vmatpush1.bf16.msra.mxu0 0
    %667 = vmatprep.mubr.bf16.mxu0 0
    %668 = vmatmul.mubr.bf16.gmra.mrb[0].mxu0 %v633
    %v669 = vpop.f32.mrb[0].mxu0
    %v670 = vadd.f32 0.0, %v669
    %v671 = vpop.f32.mrb[0].mxu0
    %v672 = vpop.f32.mrb[0].mxu0
    %v673 = vadd.f32 0.0, %v672
    %v674 = vpop.f32.mrb[0].mxu0
    %675 = vdwg.mxu0
    %v677 = vsel %vm539, %v629, 0
    %679 = vmatprep.subr.bf16.mxu0 0
    %680 = vmatpush1.bf16.msra.mxu0 %v343
    %681 = vmatprep.subr.bf16.mxu0 0
    %682 = vmatpush1.bf16.msra.mxu0 0
    %683 = vmatprep.subr.bf16.mxu0 0
    %684 = vmatpush1.bf16.msra.mxu0 0
    %685 = vmatprep.subr.bf16.mxu0 0
    %686 = vmatpush1.bf16.msra.mxu0 0
    %687 = vmatprep.subr.bf16.mxu0 0
    %688 = vmatpush1.bf16.msra.mxu0 0
    %689 = vmatprep.subr.bf16.mxu0 0
    %690 = vmatpush1.bf16.msra.mxu0 0
    %691 = vmatprep.subr.bf16.mxu0 0
    %692 = vmatpush1.bf16.msra.mxu0 0
    %693 = vmatprep.subr.bf16.mxu0 0
    %694 = vmatpush1.bf16.msra.mxu0 0
    %695 = vmatprep.subr.bf16.mxu0 0
    %696 = vmatpush1.bf16.msra.mxu0 0
    %697 = vmatprep.subr.bf16.mxu0 0
    %698 = vmatpush1.bf16.msra.mxu0 0
    %699 = vmatprep.subr.bf16.mxu0 0
    %700 = vmatpush1.bf16.msra.mxu0 0
    %701 = vmatprep.subr.bf16.mxu0 0
    %702 = vmatpush1.bf16.msra.mxu0 0
    %703 = vmatprep.subr.bf16.mxu0 0
    %704 = vmatpush1.bf16.msra.mxu0 0
    %705 = vmatprep.subr.bf16.mxu0 0
    %706 = vmatpush1.bf16.msra.mxu0 0
    %707 = vmatprep.subr.bf16.mxu0 0
    %708 = vmatpush1.bf16.msra.mxu0 0
    %709 = vmatprep.subr.bf16.mxu0 0
    %710 = vmatpush1.bf16.msra.mxu0 0
    %711 = vmatprep.mubr.bf16.mxu0 0
    %712 = vmatmul.mubr.bf16.gmra.mrb[0].mxu0 %v677
    %v713 = vpop.f32.mrb[0].mxu0
    %v714 = vadd.f32 0.0, %v713
    %v715 = vpop.f32.mrb[0].mxu0
    %v716 = vpop.f32.mrb[0].mxu0
    %v717 = vadd.f32 0.0, %v716
    %v718 = vpop.f32.mrb[0].mxu0
    %719 = vdwg.mxu0
    %v721 = vsel %vm539, %v630, 0
    %723 = vmatprep.subr.bf16.mxu0 0
    %724 = vmatpush1.bf16.msra.mxu0 %v346
    %725 = vmatprep.subr.bf16.mxu0 0
    %726 = vmatpush1.bf16.msra.mxu0 0
    %727 = vmatprep.subr.bf16.mxu0 0
    %728 = vmatpush1.bf16.msra.mxu0 0
    %729 = vmatprep.subr.bf16.mxu0 0
    %730 = vmatpush1.bf16.msra.mxu0 0
    %731 = vmatprep.subr.bf16.mxu0 0
    %732 = vmatpush1.bf16.msra.mxu0 0
    %733 = vmatprep.subr.bf16.mxu0 0
    %734 = vmatpush1.bf16.msra.mxu0 0
    %735 = vmatprep.subr.bf16.mxu0 0
    %736 = vmatpush1.bf16.msra.mxu0 0
    %737 = vmatprep.subr.bf16.mxu0 0
    %738 = vmatpush1.bf16.msra.mxu0 0
    %739 = vmatprep.subr.bf16.mxu0 0
    %740 = vmatpush1.bf16.msra.mxu0 0
    %741 = vmatprep.subr.bf16.mxu0 0
    %742 = vmatpush1.bf16.msra.mxu0 0
    %743 = vmatprep.subr.bf16.mxu0 0
    %744 = vmatpush1.bf16.msra.mxu0 0
    %745 = vmatprep.subr.bf16.mxu0 0
    %746 = vmatpush1.bf16.msra.mxu0 0
    %747 = vmatprep.subr.bf16.mxu0 0
    %748 = vmatpush1.bf16.msra.mxu0 0
    %749 = vmatprep.subr.bf16.mxu0 0
    %750 = vmatpush1.bf16.msra.mxu0 0
    %751 = vmatprep.subr.bf16.mxu0 0
    %752 = vmatpush1.bf16.msra.mxu0 0
    %753 = vmatprep.subr.bf16.mxu0 0
    %754 = vmatpush1.bf16.msra.mxu0 0
    %755 = vmatprep.mubr.bf16.mxu0 0
    %756 = vmatmul.mubr.bf16.gmra.mrb[0].mxu0 %v721
    %v757 = vpop.f32.mrb[0].mxu0
    %v758 = vadd.f32 0.0, %v757
    %v759 = vpop.f32.mrb[0].mxu0
    %v760 = vpop.f32.mrb[0].mxu0
    %v761 = vadd.f32 0.0, %v760
    %v762 = vpop.f32.mrb[0].mxu0
    %763 = vdwg.mxu0
    %v765 = vsel %vm539, %v631, 0
    %767 = vmatprep.subr.bf16.mxu0 0
    %768 = vmatpush1.bf16.msra.mxu0 %v349
    %769 = vmatprep.subr.bf16.mxu0 0
    %770 = vmatpush1.bf16.msra.mxu0 0
    %771 = vmatprep.subr.bf16.mxu0 0
    %772 = vmatpush1.bf16.msra.mxu0 0
    %773 = vmatprep.subr.bf16.mxu0 0
    %774 = vmatpush1.bf16.msra.mxu0 0
    %775 = vmatprep.subr.bf16.mxu0 0
    %776 = vmatpush1.bf16.msra.mxu0 0
    %777 = vmatprep.subr.bf16.mxu0 0
    %778 = vmatpush1.bf16.msra.mxu0 0
    %779 = vmatprep.subr.bf16.mxu0 0
    %780 = vmatpush1.bf16.msra.mxu0 0
    %781 = vmatprep.subr.bf16.mxu0 0
    %782 = vmatpush1.bf16.msra.mxu0 0
    %783 = vmatprep.subr.bf16.mxu0 0
    %784 = vmatpush1.bf16.msra.mxu0 0
    %785 = vmatprep.subr.bf16.mxu0 0
    %786 = vmatpush1.bf16.msra.mxu0 0
    %787 = vmatprep.subr.bf16.mxu0 0
    %788 = vmatpush1.bf16.msra.mxu0 0
    %789 = vmatprep.subr.bf16.mxu0 0
    %790 = vmatpush1.bf16.msra.mxu0 0
    %791 = vmatprep.subr.bf16.mxu0 0
    %792 = vmatpush1.bf16.msra.mxu0 0
    %793 = vmatprep.subr.bf16.mxu0 0
    %794 = vmatpush1.bf16.msra.mxu0 0
    %795 = vmatprep.subr.bf16.mxu0 0
    %796 = vmatpush1.bf16.msra.mxu0 0
    %797 = vmatprep.subr.bf16.mxu0 0
    %798 = vmatpush1.bf16.msra.mxu0 0
    %799 = vmatprep.mubr.bf16.mxu0 0
    %800 = vmatmul.mubr.bf16.gmra.mrb[0].mxu0 %v765
    %v801 = vpop.f32.mrb[0].mxu0
    %v802 = vadd.f32 0.0, %v801
    %v803 = vpop.f32.mrb[0].mxu0
    %v804 = vpop.f32.mrb[0].mxu0
    %v805 = vadd.f32 0.0, %v804
    %v806 = vpop.f32.mrb[0].mxu0
    %807 = vdwg.mxu0
    %v808 = vpack.c.bf16 %v673, %v670
    %v809 = vpack.c.bf16 %v717, %v714
    %v810 = vpack.c.bf16 %v761, %v758
    %v811 = vpack.c.bf16 %v805, %v802
    %813 = vrot.lane.b32.xlu0 %v338, 96
    %v814 = vpop.permute.xlu0 %813
    %816 = vrot.lane.b32.xlu0 %v339, 96
    %v817 = vpop.permute.xlu0 %816
    %v819 = vsel %vm350, %v814, 0
    %v822 = vsel %vm350, %v817, 0
    %824 = vmatprep.subr.bf16.mxu0 0
    %825 = vmatpush1.bf16.xpose.msra.mxu0 %v822
    %826 = vmatprep.subr.bf16.mxu0 0
    %827 = vmatpush1.bf16.xpose.msra.mxu0 0
    %828 = vmatprep.subr.bf16.mxu0 0
    %829 = vmatpush1.bf16.xpose.msra.mxu0 0
    %830 = vmatprep.subr.bf16.mxu0 0
    %831 = vmatpush1.bf16.xpose.msra.mxu0 0
    %832 = vmatprep.subr.bf16.mxu0 0
    %833 = vmatpush1.bf16.xpose.msra.mxu0 0
    %834 = vmatprep.subr.bf16.mxu0 0
    %835 = vmatpush1.bf16.xpose.msra.mxu0 0
    %836 = vmatprep.subr.bf16.mxu0 0
    %837 = vmatpush1.bf16.xpose.msra.mxu0 0
    %838 = vmatprep.subr.bf16.mxu0 0
    %839 = vmatpush1.bf16.xpose.msra.mxu0 0
    %840 = vmatprep.subr.bf16.mxu0 0
    %841 = vmatpush1.bf16.xpose.msra.mxu0 0
    %842 = vmatprep.subr.bf16.mxu0 0
    %843 = vmatpush1.bf16.xpose.msra.mxu0 0
    %844 = vmatprep.subr.bf16.mxu0 0
    %845 = vmatpush1.bf16.xpose.msra.mxu0 0
    %846 = vmatprep.subr.bf16.mxu0 0
    %847 = vmatpush1.bf16.xpose.msra.mxu0 0
    %848 = vmatprep.subr.bf16.mxu0 0
    %849 = vmatpush1.bf16.xpose.msra.mxu0 0
    %850 = vmatprep.subr.bf16.mxu0 0
    %851 = vmatpush1.bf16.xpose.msra.mxu0 0
    %852 = vmatprep.subr.bf16.mxu0 0
    %853 = vmatpush1.bf16.xpose.msra.mxu0 0
    %854 = vmatprep.subr.bf16.mxu0 0
    %855 = vmatpush1.bf16.xpose.msra.mxu0 0
    %856 = vmatprep.mubr.bf16.mxu0 0
    %857 = vmatmul.mubr.bf16.gmra.mrb[0].mxu0 %v819
    %v858 = vpop.f32.mrb[0].mxu0
    %v859 = vadd.f32 0.0, %v858
    %v860 = vpop.f32.mrb[0].mxu0
    %v861 = vpop.f32.mrb[0].mxu0
    %v862 = vadd.f32 0.0, %v861
    %v863 = vpop.f32.mrb[0].mxu0
    %864 = vdwg.mxu0
    %866 = vrot.lane.b32.xlu0 %v341, 96
    %v867 = vpop.permute.xlu0 %866
    %869 = vrot.lane.b32.xlu0 %v342, 96
    %v870 = vpop.permute.xlu0 %869
    %v872 = vsel %vm350, %v867, 0
    %v875 = vsel %vm350, %v870, 0
    %877 = vmatprep.subr.bf16.mxu0 0
    %878 = vmatpush1.bf16.xpose.msra.mxu0 %v875
    %879 = vmatprep.subr.bf16.mxu0 0
    %880 = vmatpush1.bf16.xpose.msra.mxu0 0
    %881 = vmatprep.subr.bf16.mxu0 0
    %882 = vmatpush1.bf16.xpose.msra.mxu0 0
    %883 = vmatprep.subr.bf16.mxu0 0
    %884 = vmatpush1.bf16.xpose.msra.mxu0 0
    %885 = vmatprep.subr.bf16.mxu0 0
    %886 = vmatpush1.bf16.xpose.msra.mxu0 0
    %887 = vmatprep.subr.bf16.mxu0 0
    %888 = vmatpush1.bf16.xpose.msra.mxu0 0
    %889 = vmatprep.subr.bf16.mxu0 0
    %890 = vmatpush1.bf16.xpose.msra.mxu0 0
    %891 = vmatprep.subr.bf16.mxu0 0
    %892 = vmatpush1.bf16.xpose.msra.mxu0 0
    %893 = vmatprep.subr.bf16.mxu0 0
    %894 = vmatpush1.bf16.xpose.msra.mxu0 0
    %895 = vmatprep.subr.bf16.mxu0 0
    %896 = vmatpush1.bf16.xpose.msra.mxu0 0
    %897 = vmatprep.subr.bf16.mxu0 0
    %898 = vmatpush1.bf16.xpose.msra.mxu0 0
    %899 = vmatprep.subr.bf16.mxu0 0
    %900 = vmatpush1.bf16.xpose.msra.mxu0 0
    %901 = vmatprep.subr.bf16.mxu0 0
    %902 = vmatpush1.bf16.xpose.msra.mxu0 0
    %903 = vmatprep.subr.bf16.mxu0 0
    %904 = vmatpush1.bf16.xpose.msra.mxu0 0
    %905 = vmatprep.subr.bf16.mxu0 0
    %906 = vmatpush1.bf16.xpose.msra.mxu0 0
    %907 = vmatprep.subr.bf16.mxu0 0
    %908 = vmatpush1.bf16.xpose.msra.mxu0 0
    %909 = vmatprep.mubr.bf16.mxu0 0
    %910 = vmatmul.mubr.bf16.gmra.mrb[0].mxu0 %v872
    %v911 = vpop.f32.mrb[0].mxu0
    %v912 = vadd.f32 0.0, %v911
    %v913 = vpop.f32.mrb[0].mxu0
    %v914 = vpop.f32.mrb[0].mxu0
    %v915 = vadd.f32 0.0, %v914
    %v916 = vpop.f32.mrb[0].mxu0
    %917 = vdwg.mxu0
    %919 = vrot.lane.b32.xlu0 %v344, 96
    %v920 = vpop.permute.xlu0 %919
    %922 = vrot.lane.b32.xlu0 %v345, 96
    %v923 = vpop.permute.xlu0 %922
    %v925 = vsel %vm350, %v920, 0
    %v928 = vsel %vm350, %v923, 0
    %930 = vmatprep.subr.bf16.mxu0 0
    %931 = vmatpush1.bf16.xpose.msra.mxu0 %v928
    %932 = vmatprep.subr.bf16.mxu0 0
    %933 = vmatpush1.bf16.xpose.msra.mxu0 0
    %934 = vmatprep.subr.bf16.mxu0 0
    %935 = vmatpush1.bf16.xpose.msra.mxu0 0
    %936 = vmatprep.subr.bf16.mxu0 0
    %937 = vmatpush1.bf16.xpose.msra.mxu0 0
    %938 = vmatprep.subr.bf16.mxu0 0
    %939 = vmatpush1.bf16.xpose.msra.mxu0 0
    %940 = vmatprep.subr.bf16.mxu0 0
    %941 = vmatpush1.bf16.xpose.msra.mxu0 0
    %942 = vmatprep.subr.bf16.mxu0 0
    %943 = vmatpush1.bf16.xpose.msra.mxu0 0
    %944 = vmatprep.subr.bf16.mxu0 0
    %945 = vmatpush1.bf16.xpose.msra.mxu0 0
    %946 = vmatprep.subr.bf16.mxu0 0
    %947 = vmatpush1.bf16.xpose.msra.mxu0 0
    %948 = vmatprep.subr.bf16.mxu0 0
    %949 = vmatpush1.bf16.xpose.msra.mxu0 0
    %950 = vmatprep.subr.bf16.mxu0 0
    %951 = vmatpush1.bf16.xpose.msra.mxu0 0
    %952 = vmatprep.subr.bf16.mxu0 0
    %953 = vmatpush1.bf16.xpose.msra.mxu0 0
    %954 = vmatprep.subr.bf16.mxu0 0
    %955 = vmatpush1.bf16.xpose.msra.mxu0 0
    %956 = vmatprep.subr.bf16.mxu0 0
    %957 = vmatpush1.bf16.xpose.msra.mxu0 0
    %958 = vmatprep.subr.bf16.mxu0 0
    %959 = vmatpush1.bf16.xpose.msra.mxu0 0
    %960 = vmatprep.subr.bf16.mxu0 0
    %961 = vmatpush1.bf16.xpose.msra.mxu0 0
    %962 = vmatprep.mubr.bf16.mxu0 0
    %963 = vmatmul.mubr.bf16.gmra.mrb[0].mxu0 %v925
    %v964 = vpop.f32.mrb[0].mxu0
    %v965 = vadd.f32 0.0, %v964
    %v966 = vpop.f32.mrb[0].mxu0
    %v967 = vpop.f32.mrb[0].mxu0
    %v968 = vadd.f32 0.0, %v967
    %v969 = vpop.f32.mrb[0].mxu0
    %970 = vdwg.mxu0
    %972 = vrot.lane.b32.xlu0 %v347, 96
    %v973 = vpop.permute.xlu0 %972
    %975 = vrot.lane.b32.xlu0 %v348, 96
    %v976 = vpop.permute.xlu0 %975
    %v978 = vsel %vm350, %v973, 0
    %v981 = vsel %vm350, %v976, 0
    %983 = vmatprep.subr.bf16.mxu0 0
    %984 = vmatpush1.bf16.xpose.msra.mxu0 %v981
    %985 = vmatprep.subr.bf16.mxu0 0
    %986 = vmatpush1.bf16.xpose.msra.mxu0 0
    %987 = vmatprep.subr.bf16.mxu0 0
    %988 = vmatpush1.bf16.xpose.msra.mxu0 0
    %989 = vmatprep.subr.bf16.mxu0 0
    %990 = vmatpush1.bf16.xpose.msra.mxu0 0
    %991 = vmatprep.subr.bf16.mxu0 0
    %992 = vmatpush1.bf16.xpose.msra.mxu0 0
    %993 = vmatprep.subr.bf16.mxu0 0
    %994 = vmatpush1.bf16.xpose.msra.mxu0 0
    %995 = vmatprep.subr.bf16.mxu0 0
    %996 = vmatpush1.bf16.xpose.msra.mxu0 0
    %997 = vmatprep.subr.bf16.mxu0 0
    %998 = vmatpush1.bf16.xpose.msra.mxu0 0
    %999 = vmatprep.subr.bf16.mxu0 0
    %1000 = vmatpush1.bf16.xpose.msra.mxu0 0
    %1001 = vmatprep.subr.bf16.mxu0 0
    %1002 = vmatpush1.bf16.xpose.msra.mxu0 0
    %1003 = vmatprep.subr.bf16.mxu0 0
    %1004 = vmatpush1.bf16.xpose.msra.mxu0 0
    %1005 = vmatprep.subr.bf16.mxu0 0
    %1006 = vmatpush1.bf16.xpose.msra.mxu0 0
    %1007 = vmatprep.subr.bf16.mxu0 0
    %1008 = vmatpush1.bf16.xpose.msra.mxu0 0
    %1009 = vmatprep.subr.bf16.mxu0 0
    %1010 = vmatpush1.bf16.xpose.msra.mxu0 0
    %1011 = vmatprep.subr.bf16.mxu0 0
    %1012 = vmatpush1.bf16.xpose.msra.mxu0 0
    %1013 = vmatprep.subr.bf16.mxu0 0
    %1014 = vmatpush1.bf16.xpose.msra.mxu0 0
    %1015 = vmatprep.mubr.bf16.mxu0 0
    %1016 = vmatmul.mubr.bf16.gmra.mrb[0].mxu0 %v978
    %v1017 = vpop.f32.mrb[0].mxu0
    %v1018 = vadd.f32 0.0, %v1017
    %v1019 = vpop.f32.mrb[0].mxu0
    %v1020 = vpop.f32.mrb[0].mxu0
    %v1021 = vadd.f32 0.0, %v1020
    %v1022 = vpop.f32.mrb[0].mxu0
    %1023 = vdwg.mxu0
    %v1024 = vsel %vm539, %v859, -inf
    %1025 = vmax.xlane.f32.xlu0 %v1024
    %v1026 = vpop.xlane.xlu0 %1025
    %v1027 = vsel %vm539, %v862, -inf
    %1028 = vmax.xlane.f32.xlu0 %v1027
    %v1029 = vpop.xlane.xlu0 %1028
    %v1030 = vsel %vm539, %v912, -inf
    %1031 = vmax.xlane.f32.xlu0 %v1030
    %v1032 = vpop.xlane.xlu0 %1031
    %v1033 = vsel %vm539, %v915, -inf
    %1034 = vmax.xlane.f32.xlu0 %v1033
    %v1035 = vpop.xlane.xlu0 %1034
    %v1036 = vsel %vm539, %v965, -inf
    %1037 = vmax.xlane.f32.xlu0 %v1036
    %v1038 = vpop.xlane.xlu0 %1037
    %v1039 = vsel %vm539, %v968, -inf
    %1040 = vmax.xlane.f32.xlu0 %v1039
    %v1041 = vpop.xlane.xlu0 %1040
    %v1042 = vsel %vm539, %v1018, -inf
    %1043 = vmax.xlane.f32.xlu0 %v1042
    %v1044 = vpop.xlane.xlu0 %1043
    %v1045 = vsel %vm539, %v1021, -inf
    %1046 = vmax.xlane.f32.xlu0 %v1045
    %v1047 = vpop.xlane.xlu0 %1046
    %v1048 = vsub.f32 %v859, %v1026
    %v1049 = vsub.f32 %v862, %v1029
    %v1050 = vsub.f32 %v912, %v1032
    %v1051 = vsub.f32 %v915, %v1035
    %v1052 = vsub.f32 %v965, %v1038
    %v1053 = vsub.f32 %v968, %v1041
    %v1054 = vsub.f32 %v1018, %v1044
    %v1055 = vsub.f32 %v1021, %v1047
    %v1056 = vmul.f32 %v1048, 1.442695
    %v1057 = vpow.pop %v1056
    %v1058 = vmul.f32 %v1049, 1.442695
    %v1059 = vpow.pop %v1058
    %v1060 = vmul.f32 %v1050, 1.442695
    %v1061 = vpow.pop %v1060
    %v1062 = vmul.f32 %v1051, 1.442695
    %v1063 = vpow.pop %v1062
    %v1064 = vmul.f32 %v1052, 1.442695
    %v1065 = vpow.pop %v1064
    %v1066 = vmul.f32 %v1053, 1.442695
    %v1067 = vpow.pop %v1066
    %v1068 = vmul.f32 %v1054, 1.442695
    %v1069 = vpow.pop %v1068
    %v1070 = vmul.f32 %v1055, 1.442695
    %v1071 = vpow.pop %v1070
    %v1072 = vsel %vm539, %v1057, 0.0
    %1073 = vadd.xlane.f32.xlu0 %v1072
    %v1074 = vpop.xlane.xlu0 %1073
    %v1075 = vsel %vm539, %v1059, 0.0
    %1076 = vadd.xlane.f32.xlu0 %v1075
    %v1077 = vpop.xlane.xlu0 %1076
    %v1078 = vsel %vm539, %v1061, 0.0
    %1079 = vadd.xlane.f32.xlu0 %v1078
    %v1080 = vpop.xlane.xlu0 %1079
    %v1081 = vsel %vm539, %v1063, 0.0
    %1082 = vadd.xlane.f32.xlu0 %v1081
    %v1083 = vpop.xlane.xlu0 %1082
    %v1084 = vsel %vm539, %v1065, 0.0
    %1085 = vadd.xlane.f32.xlu0 %v1084
    %v1086 = vpop.xlane.xlu0 %1085
    %v1087 = vsel %vm539, %v1067, 0.0
    %1088 = vadd.xlane.f32.xlu0 %v1087
    %v1089 = vpop.xlane.xlu0 %1088
    %v1090 = vsel %vm539, %v1069, 0.0
    %1091 = vadd.xlane.f32.xlu0 %v1090
    %v1092 = vpop.xlane.xlu0 %1091
    %v1093 = vsel %vm539, %v1071, 0.0
    %1094 = vadd.xlane.f32.xlu0 %v1093
    %v1095 = vpop.xlane.xlu0 %1094
    %v1096 = vrcp.pop %v1074
    %v1097 = vrcp.pop %v1077
    %v1098 = vrcp.pop %v1080
    %v1099 = vrcp.pop %v1083
    %v1100 = vrcp.pop %v1086
    %v1101 = vrcp.pop %v1089
    %v1102 = vrcp.pop %v1092
    %v1103 = vrcp.pop %v1095
    %v1104 = vmul.f32 %v1057, %v1096
    %v1105 = vmul.f32 %v1059, %v1097
    %v1106 = vmul.f32 %v1061, %v1098
    %v1107 = vmul.f32 %v1063, %v1099
    %v1108 = vmul.f32 %v1065, %v1100
    %v1109 = vmul.f32 %v1067, %v1101
    %v1110 = vmul.f32 %v1069, %v1102
    %v1111 = vmul.f32 %v1071, %v1103
    %v1112 = vpack.c.bf16 %v1105, %v1104
    %v1113 = vpack.c.bf16 %v1107, %v1106
    %v1114 = vpack.c.bf16 %v1109, %v1108
    %v1115 = vpack.c.bf16 %v1111, %v1110
    %1117 = vrot.lane.b32.xlu0 %v340, 96
    %v1118 = vpop.permute.xlu0 %1117
    %v1121 = vsel %vm539, %v1112, 0
    %1123 = vmatprep.subr.bf16.mxu0 0
    %1124 = vmatpush1.bf16.msra.mxu0 %v1118
    %1125 = vmatprep.subr.bf16.mxu0 0
    %1126 = vmatpush1.bf16.msra.mxu0 0
    %1127 = vmatprep.subr.bf16.mxu0 0
    %1128 = vmatpush1.bf16.msra.mxu0 0
    %1129 = vmatprep.subr.bf16.mxu0 0
    %1130 = vmatpush1.bf16.msra.mxu0 0
    %1131 = vmatprep.subr.bf16.mxu0 0
    %1132 = vmatpush1.bf16.msra.mxu0 0
    %1133 = vmatprep.subr.bf16.mxu0 0
    %1134 = vmatpush1.bf16.msra.mxu0 0
    %1135 = vmatprep.subr.bf16.mxu0 0
    %1136 = vmatpush1.bf16.msra.mxu0 0
    %1137 = vmatprep.subr.bf16.mxu0 0
    %1138 = vmatpush1.bf16.msra.mxu0 0
    %1139 = vmatprep.subr.bf16.mxu0 0
    %1140 = vmatpush1.bf16.msra.mxu0 0
    %1141 = vmatprep.subr.bf16.mxu0 0
    %1142 = vmatpush1.bf16.msra.mxu0 0
    %1143 = vmatprep.subr.bf16.mxu0 0
    %1144 = vmatpush1.bf16.msra.mxu0 0
    %1145 = vmatprep.subr.bf16.mxu0 0
    %1146 = vmatpush1.bf16.msra.mxu0 0
    %1147 = vmatprep.subr.bf16.mxu0 0
    %1148 = vmatpush1.bf16.msra.mxu0 0
    %1149 = vmatprep.subr.bf16.mxu0 0
    %1150 = vmatpush1.bf16.msra.mxu0 0
    %1151 = vmatprep.subr.bf16.mxu0 0
    %1152 = vmatpush1.bf16.msra.mxu0 0
    %1153 = vmatprep.subr.bf16.mxu0 0
    %1154 = vmatpush1.bf16.msra.mxu0 0
    %1155 = vmatprep.mubr.bf16.mxu0 0
    %1156 = vmatmul.mubr.bf16.gmra.mrb[0].mxu0 %v1121
    %v1157 = vpop.f32.mrb[0].mxu0
    %v1158 = vadd.f32 0.0, %v1157
    %v1159 = vpop.f32.mrb[0].mxu0
    %v1160 = vpop.f32.mrb[0].mxu0
    %v1161 = vadd.f32 0.0, %v1160
    %v1162 = vpop.f32.mrb[0].mxu0
    %1163 = vdwg.mxu0
    %1165 = vrot.lane.b32.xlu0 %v343, 96
    %v1166 = vpop.permute.xlu0 %1165
    %v1169 = vsel %vm539, %v1113, 0
    %1171 = vmatprep.subr.bf16.mxu0 0
    %1172 = vmatpush1.bf16.msra.mxu0 %v1166
    %1173 = vmatprep.subr.bf16.mxu0 0
    %1174 = vmatpush1.bf16.msra.mxu0 0
    %1175 = vmatprep.subr.bf16.mxu0 0
    %1176 = vmatpush1.bf16.msra.mxu0 0
    %1177 = vmatprep.subr.bf16.mxu0 0
    %1178 = vmatpush1.bf16.msra.mxu0 0
    %1179 = vmatprep.subr.bf16.mxu0 0
    %1180 = vmatpush1.bf16.msra.mxu0 0
    %1181 = vmatprep.subr.bf16.mxu0 0
    %1182 = vmatpush1.bf16.msra.mxu0 0
    %1183 = vmatprep.subr.bf16.mxu0 0
    %1184 = vmatpush1.bf16.msra.mxu0 0
    %1185 = vmatprep.subr.bf16.mxu0 0
    %1186 = vmatpush1.bf16.msra.mxu0 0
    %1187 = vmatprep.subr.bf16.mxu0 0
    %1188 = vmatpush1.bf16.msra.mxu0 0
    %1189 = vmatprep.subr.bf16.mxu0 0
    %1190 = vmatpush1.bf16.msra.mxu0 0
    %1191 = vmatprep.subr.bf16.mxu0 0
    %1192 = vmatpush1.bf16.msra.mxu0 0
    %1193 = vmatprep.subr.bf16.mxu0 0
    %1194 = vmatpush1.bf16.msra.mxu0 0
    %1195 = vmatprep.subr.bf16.mxu0 0
    %1196 = vmatpush1.bf16.msra.mxu0 0
    %1197 = vmatprep.subr.bf16.mxu0 0
    %1198 = vmatpush1.bf16.msra.mxu0 0
    %1199 = vmatprep.subr.bf16.mxu0 0
    %1200 = vmatpush1.bf16.msra.mxu0 0
    %1201 = vmatprep.subr.bf16.mxu0 0
    %1202 = vmatpush1.bf16.msra.mxu0 0
    %1203 = vmatprep.mubr.bf16.mxu0 0
    %1204 = vmatmul.mubr.bf16.gmra.mrb[0].mxu0 %v1169
    %v1205 = vpop.f32.mrb[0].mxu0
    %v1206 = vadd.f32 0.0, %v1205
    %v1207 = vpop.f32.mrb[0].mxu0
    %v1208 = vpop.f32.mrb[0].mxu0
    %v1209 = vadd.f32 0.0, %v1208
    %v1210 = vpop.f32.mrb[0].mxu0
    %1211 = vdwg.mxu0
    %1213 = vrot.lane.b32.xlu0 %v346, 96
    %v1214 = vpop.permute.xlu0 %1213
    %v1217 = vsel %vm539, %v1114, 0
    %1219 = vmatprep.subr.bf16.mxu0 0
    %1220 = vmatpush1.bf16.msra.mxu0 %v1214
    %1221 = vmatprep.subr.bf16.mxu0 0
    %1222 = vmatpush1.bf16.msra.mxu0 0
    %1223 = vmatprep.subr.bf16.mxu0 0
    %1224 = vmatpush1.bf16.msra.mxu0 0
    %1225 = vmatprep.subr.bf16.mxu0 0
    %1226 = vmatpush1.bf16.msra.mxu0 0
    %1227 = vmatprep.subr.bf16.mxu0 0
    %1228 = vmatpush1.bf16.msra.mxu0 0
    %1229 = vmatprep.subr.bf16.mxu0 0
    %1230 = vmatpush1.bf16.msra.mxu0 0
    %1231 = vmatprep.subr.bf16.mxu0 0
    %1232 = vmatpush1.bf16.msra.mxu0 0
    %1233 = vmatprep.subr.bf16.mxu0 0
    %1234 = vmatpush1.bf16.msra.mxu0 0
    %1235 = vmatprep.subr.bf16.mxu0 0
    %1236 = vmatpush1.bf16.msra.mxu0 0
    %1237 = vmatprep.subr.bf16.mxu0 0
    %1238 = vmatpush1.bf16.msra.mxu0 0
    %1239 = vmatprep.subr.bf16.mxu0 0
    %1240 = vmatpush1.bf16.msra.mxu0 0
    %1241 = vmatprep.subr.bf16.mxu0 0
    %1242 = vmatpush1.bf16.msra.mxu0 0
    %1243 = vmatprep.subr.bf16.mxu0 0
    %1244 = vmatpush1.bf16.msra.mxu0 0
    %1245 = vmatprep.subr.bf16.mxu0 0
    %1246 = vmatpush1.bf16.msra.mxu0 0
    %1247 = vmatprep.subr.bf16.mxu0 0
    %1248 = vmatpush1.bf16.msra.mxu0 0
    %1249 = vmatprep.subr.bf16.mxu0 0
    %1250 = vmatpush1.bf16.msra.mxu0 0
    %1251 = vmatprep.mubr.bf16.mxu0 0
    %1252 = vmatmul.mubr.bf16.gmra.mrb[0].mxu0 %v1217
    %v1253 = vpop.f32.mrb[0].mxu0
    %v1254 = vadd.f32 0.0, %v1253
    %v1255 = vpop.f32.mrb[0].mxu0
    %v1256 = vpop.f32.mrb[0].mxu0
    %v1257 = vadd.f32 0.0, %v1256
    %v1258 = vpop.f32.mrb[0].mxu0
    %1259 = vdwg.mxu0
    %1261 = vrot.lane.b32.xlu0 %v349, 96
    %v1262 = vpop.permute.xlu0 %1261
    %v1265 = vsel %vm539, %v1115, 0
    %1267 = vmatprep.subr.bf16.mxu0 0
    %1268 = vmatpush1.bf16.msra.mxu0 %v1262
    %1269 = vmatprep.subr.bf16.mxu0 0
    %1270 = vmatpush1.bf16.msra.mxu0 0
    %1271 = vmatprep.subr.bf16.mxu0 0
    %1272 = vmatpush1.bf16.msra.mxu0 0
    %1273 = vmatprep.subr.bf16.mxu0 0
    %1274 = vmatpush1.bf16.msra.mxu0 0
    %1275 = vmatprep.subr.bf16.mxu0 0
    %1276 = vmatpush1.bf16.msra.mxu0 0
    %1277 = vmatprep.subr.bf16.mxu0 0
    %1278 = vmatpush1.bf16.msra.mxu0 0
    %1279 = vmatprep.subr.bf16.mxu0 0
    %1280 = vmatpush1.bf16.msra.mxu0 0
    %1281 = vmatprep.subr.bf16.mxu0 0
    %1282 = vmatpush1.bf16.msra.mxu0 0
    %1283 = vmatprep.subr.bf16.mxu0 0
    %1284 = vmatpush1.bf16.msra.mxu0 0
    %1285 = vmatprep.subr.bf16.mxu0 0
    %1286 = vmatpush1.bf16.msra.mxu0 0
    %1287 = vmatprep.subr.bf16.mxu0 0
    %1288 = vmatpush1.bf16.msra.mxu0 0
    %1289 = vmatprep.subr.bf16.mxu0 0
    %1290 = vmatpush1.bf16.msra.mxu0 0
    %1291 = vmatprep.subr.bf16.mxu0 0
    %1292 = vmatpush1.bf16.msra.mxu0 0
    %1293 = vmatprep.subr.bf16.mxu0 0
    %1294 = vmatpush1.bf16.msra.mxu0 0
    %1295 = vmatprep.subr.bf16.mxu0 0
    %1296 = vmatpush1.bf16.msra.mxu0 0
    %1297 = vmatprep.subr.bf16.mxu0 0
    %1298 = vmatpush1.bf16.msra.mxu0 0
    %1299 = vmatprep.mubr.bf16.mxu0 0
    %1300 = vmatmul.mubr.bf16.gmra.mrb[0].mxu0 %v1265
    %v1301 = vpop.f32.mrb[0].mxu0
    %v1302 = vadd.f32 0.0, %v1301
    %v1303 = vpop.f32.mrb[0].mxu0
    %v1304 = vpop.f32.mrb[0].mxu0
    %v1305 = vadd.f32 0.0, %v1304
    %v1306 = vpop.f32.mrb[0].mxu0
    %1307 = vdwg.mxu0
    %v1308 = vpack.c.bf16 %v1161, %v1158
    %v1309 = vpack.c.bf16 %v1209, %v1206
    %v1310 = vpack.c.bf16 %v1257, %v1254
    %v1311 = vpack.c.bf16 %v1305, %v1302
    %1312 = vrot.lane.b32.xlu0 %v338, 64
    %v1313 = vpop.permute.xlu0 %1312
    %1314 = vrot.lane.b32.xlu0 %v339, 64
    %v1315 = vpop.permute.xlu0 %1314
    %v1317 = vsel %vm350, %v1313, 0
    %v1320 = vsel %vm350, %v1315, 0
    %1322 = vmatprep.subr.bf16.mxu0 0
    %1323 = vmatpush1.bf16.xpose.msra.mxu0 %v1320
    %1324 = vmatprep.subr.bf16.mxu0 0
    %1325 = vmatpush1.bf16.xpose.msra.mxu0 0
    %1326 = vmatprep.subr.bf16.mxu0 0
    %1327 = vmatpush1.bf16.xpose.msra.mxu0 0
    %1328 = vmatprep.subr.bf16.mxu0 0
    %1329 = vmatpush1.bf16.xpose.msra.mxu0 0
    %1330 = vmatprep.subr.bf16.mxu0 0
    %1331 = vmatpush1.bf16.xpose.msra.mxu0 0
    %1332 = vmatprep.subr.bf16.mxu0 0
    %1333 = vmatpush1.bf16.xpose.msra.mxu0 0
    %1334 = vmatprep.subr.bf16.mxu0 0
    %1335 = vmatpush1.bf16.xpose.msra.mxu0 0
    %1336 = vmatprep.subr.bf16.mxu0 0
    %1337 = vmatpush1.bf16.xpose.msra.mxu0 0
    %1338 = vmatprep.subr.bf16.mxu0 0
    %1339 = vmatpush1.bf16.xpose.msra.mxu0 0
    %1340 = vmatprep.subr.bf16.mxu0 0
    %1341 = vmatpush1.bf16.xpose.msra.mxu0 0
    %1342 = vmatprep.subr.bf16.mxu0 0
    %1343 = vmatpush1.bf16.xpose.msra.mxu0 0
    %1344 = vmatprep.subr.bf16.mxu0 0
    %1345 = vmatpush1.bf16.xpose.msra.mxu0 0
    %1346 = vmatprep.subr.bf16.mxu0 0
    %1347 = vmatpush1.bf16.xpose.msra.mxu0 0
    %1348 = vmatprep.subr.bf16.mxu0 0
    %1349 = vmatpush1.bf16.xpose.msra.mxu0 0
    %1350 = vmatprep.subr.bf16.mxu0 0
    %1351 = vmatpush1.bf16.xpose.msra.mxu0 0
    %1352 = vmatprep.subr.bf16.mxu0 0
    %1353 = vmatpush1.bf16.xpose.msra.mxu0 0
    %1354 = vmatprep.mubr.bf16.mxu0 0
    %1355 = vmatmul.mubr.bf16.gmra.mrb[0].mxu0 %v1317
    %v1356 = vpop.f32.mrb[0].mxu0
    %v1357 = vadd.f32 0.0, %v1356
    %v1358 = vpop.f32.mrb[0].mxu0
    %v1359 = vpop.f32.mrb[0].mxu0
    %v1360 = vadd.f32 0.0, %v1359
    %v1361 = vpop.f32.mrb[0].mxu0
    %1362 = vdwg.mxu0
    %1363 = vrot.lane.b32.xlu0 %v341, 64
    %v1364 = vpop.permute.xlu0 %1363
    %1365 = vrot.lane.b32.xlu0 %v342, 64
    %v1366 = vpop.permute.xlu0 %1365
    %v1368 = vsel %vm350, %v1364, 0
    %v1371 = vsel %vm350, %v1366, 0
    %1373 = vmatprep.subr.bf16.mxu0 0
    %1374 = vmatpush1.bf16.xpose.msra.mxu0 %v1371
    %1375 = vmatprep.subr.bf16.mxu0 0
    %1376 = vmatpush1.bf16.xpose.msra.mxu0 0
    %1377 = vmatprep.subr.bf16.mxu0 0
    %1378 = vmatpush1.bf16.xpose.msra.mxu0 0
    %1379 = vmatprep.subr.bf16.mxu0 0
    %1380 = vmatpush1.bf16.xpose.msra.mxu0 0
    %1381 = vmatprep.subr.bf16.mxu0 0
    %1382 = vmatpush1.bf16.xpose.msra.mxu0 0
    %1383 = vmatprep.subr.bf16.mxu0 0
    %1384 = vmatpush1.bf16.xpose.msra.mxu0 0
    %1385 = vmatprep.subr.bf16.mxu0 0
    %1386 = vmatpush1.bf16.xpose.msra.mxu0 0
    %1387 = vmatprep.subr.bf16.mxu0 0
    %1388 = vmatpush1.bf16.xpose.msra.mxu0 0
    %1389 = vmatprep.subr.bf16.mxu0 0
    %1390 = vmatpush1.bf16.xpose.msra.mxu0 0
    %1391 = vmatprep.subr.bf16.mxu0 0
    %1392 = vmatpush1.bf16.xpose.msra.mxu0 0
    %1393 = vmatprep.subr.bf16.mxu0 0
    %1394 = vmatpush1.bf16.xpose.msra.mxu0 0
    %1395 = vmatprep.subr.bf16.mxu0 0
    %1396 = vmatpush1.bf16.xpose.msra.mxu0 0
    %1397 = vmatprep.subr.bf16.mxu0 0
    %1398 = vmatpush1.bf16.xpose.msra.mxu0 0
    %1399 = vmatprep.subr.bf16.mxu0 0
    %1400 = vmatpush1.bf16.xpose.msra.mxu0 0
    %1401 = vmatprep.subr.bf16.mxu0 0
    %1402 = vmatpush1.bf16.xpose.msra.mxu0 0
    %1403 = vmatprep.subr.bf16.mxu0 0
    %1404 = vmatpush1.bf16.xpose.msra.mxu0 0
    %1405 = vmatprep.mubr.bf16.mxu0 0
    %1406 = vmatmul.mubr.bf16.gmra.mrb[0].mxu0 %v1368
    %v1407 = vpop.f32.mrb[0].mxu0
    %v1408 = vadd.f32 0.0, %v1407
    %v1409 = vpop.f32.mrb[0].mxu0
    %v1410 = vpop.f32.mrb[0].mxu0
    %v1411 = vadd.f32 0.0, %v1410
    %v1412 = vpop.f32.mrb[0].mxu0
    %1413 = vdwg.mxu0
    %1414 = vrot.lane.b32.xlu0 %v344, 64
    %v1415 = vpop.permute.xlu0 %1414
    %1416 = vrot.lane.b32.xlu0 %v345, 64
    %v1417 = vpop.permute.xlu0 %1416
    %v1419 = vsel %vm350, %v1415, 0
    %v1422 = vsel %vm350, %v1417, 0
    %1424 = vmatprep.subr.bf16.mxu0 0
    %1425 = vmatpush1.bf16.xpose.msra.mxu0 %v1422
    %1426 = vmatprep.subr.bf16.mxu0 0
    %1427 = vmatpush1.bf16.xpose.msra.mxu0 0
    %1428 = vmatprep.subr.bf16.mxu0 0
    %1429 = vmatpush1.bf16.xpose.msra.mxu0 0
    %1430 = vmatprep.subr.bf16.mxu0 0
    %1431 = vmatpush1.bf16.xpose.msra.mxu0 0
    %1432 = vmatprep.subr.bf16.mxu0 0
    %1433 = vmatpush1.bf16.xpose.msra.mxu0 0
    %1434 = vmatprep.subr.bf16.mxu0 0
    %1435 = vmatpush1.bf16.xpose.msra.mxu0 0
    %1436 = vmatprep.subr.bf16.mxu0 0
    %1437 = vmatpush1.bf16.xpose.msra.mxu0 0
    %1438 = vmatprep.subr.bf16.mxu0 0
    %1439 = vmatpush1.bf16.xpose.msra.mxu0 0
    %1440 = vmatprep.subr.bf16.mxu0 0
    %1441 = vmatpush1.bf16.xpose.msra.mxu0 0
    %1442 = vmatprep.subr.bf16.mxu0 0
    %1443 = vmatpush1.bf16.xpose.msra.mxu0 0
    %1444 = vmatprep.subr.bf16.mxu0 0
    %1445 = vmatpush1.bf16.xpose.msra.mxu0 0
    %1446 = vmatprep.subr.bf16.mxu0 0
    %1447 = vmatpush1.bf16.xpose.msra.mxu0 0
    %1448 = vmatprep.subr.bf16.mxu0 0
    %1449 = vmatpush1.bf16.xpose.msra.mxu0 0
    %1450 = vmatprep.subr.bf16.mxu0 0
    %1451 = vmatpush1.bf16.xpose.msra.mxu0 0
    %1452 = vmatprep.subr.bf16.mxu0 0
    %1453 = vmatpush1.bf16.xpose.msra.mxu0 0
    %1454 = vmatprep.subr.bf16.mxu0 0
    %1455 = vmatpush1.bf16.xpose.msra.mxu0 0
    %1456 = vmatprep.mubr.bf16.mxu0 0
    %1457 = vmatmul.mubr.bf16.gmra.mrb[0].mxu0 %v1419
    %v1458 = vpop.f32.mrb[0].mxu0
    %v1459 = vadd.f32 0.0, %v1458
    %v1460 = vpop.f32.mrb[0].mxu0
    %v1461 = vpop.f32.mrb[0].mxu0
    %v1462 = vadd.f32 0.0, %v1461
    %v1463 = vpop.f32.mrb[0].mxu0
    %1464 = vdwg.mxu0
    %1465 = vrot.lane.b32.xlu0 %v347, 64
    %v1466 = vpop.permute.xlu0 %1465
    %1467 = vrot.lane.b32.xlu0 %v348, 64
    %v1468 = vpop.permute.xlu0 %1467
    %v1470 = vsel %vm350, %v1466, 0
    %v1473 = vsel %vm350, %v1468, 0
    %1475 = vmatprep.subr.bf16.mxu0 0
    %1476 = vmatpush1.bf16.xpose.msra.mxu0 %v1473
    %1477 = vmatprep.subr.bf16.mxu0 0
    %1478 = vmatpush1.bf16.xpose.msra.mxu0 0
    %1479 = vmatprep.subr.bf16.mxu0 0
    %1480 = vmatpush1.bf16.xpose.msra.mxu0 0
    %1481 = vmatprep.subr.bf16.mxu0 0
    %1482 = vmatpush1.bf16.xpose.msra.mxu0 0
    %1483 = vmatprep.subr.bf16.mxu0 0
    %1484 = vmatpush1.bf16.xpose.msra.mxu0 0
    %1485 = vmatprep.subr.bf16.mxu0 0
    %1486 = vmatpush1.bf16.xpose.msra.mxu0 0
    %1487 = vmatprep.subr.bf16.mxu0 0
    %1488 = vmatpush1.bf16.xpose.msra.mxu0 0
    %1489 = vmatprep.subr.bf16.mxu0 0
    %1490 = vmatpush1.bf16.xpose.msra.mxu0 0
    %1491 = vmatprep.subr.bf16.mxu0 0
    %1492 = vmatpush1.bf16.xpose.msra.mxu0 0
    %1493 = vmatprep.subr.bf16.mxu0 0
    %1494 = vmatpush1.bf16.xpose.msra.mxu0 0
    %1495 = vmatprep.subr.bf16.mxu0 0
    %1496 = vmatpush1.bf16.xpose.msra.mxu0 0
    %1497 = vmatprep.subr.bf16.mxu0 0
    %1498 = vmatpush1.bf16.xpose.msra.mxu0 0
    %1499 = vmatprep.subr.bf16.mxu0 0
    %1500 = vmatpush1.bf16.xpose.msra.mxu0 0
    %1501 = vmatprep.subr.bf16.mxu0 0
    %1502 = vmatpush1.bf16.xpose.msra.mxu0 0
    %1503 = vmatprep.subr.bf16.mxu0 0
    %1504 = vmatpush1.bf16.xpose.msra.mxu0 0
    %1505 = vmatprep.subr.bf16.mxu0 0
    %1506 = vmatpush1.bf16.xpose.msra.mxu0 0
    %1507 = vmatprep.mubr.bf16.mxu0 0
    %1508 = vmatmul.mubr.bf16.gmra.mrb[0].mxu0 %v1470
    %v1509 = vpop.f32.mrb[0].mxu0
    %v1510 = vadd.f32 0.0, %v1509
    %v1511 = vpop.f32.mrb[0].mxu0
    %v1512 = vpop.f32.mrb[0].mxu0
    %v1513 = vadd.f32 0.0, %v1512
    %v1514 = vpop.f32.mrb[0].mxu0
    %1515 = vdwg.mxu0
    %v1516 = vsel %vm539, %v1357, -inf
    %1517 = vmax.xlane.f32.xlu0 %v1516
    %v1518 = vpop.xlane.xlu0 %1517
    %v1519 = vsel %vm539, %v1360, -inf
    %1520 = vmax.xlane.f32.xlu0 %v1519
    %v1521 = vpop.xlane.xlu0 %1520
    %v1522 = vsel %vm539, %v1408, -inf
    %1523 = vmax.xlane.f32.xlu0 %v1522
    %v1524 = vpop.xlane.xlu0 %1523
    %v1525 = vsel %vm539, %v1411, -inf
    %1526 = vmax.xlane.f32.xlu0 %v1525
    %v1527 = vpop.xlane.xlu0 %1526
    %v1528 = vsel %vm539, %v1459, -inf
    %1529 = vmax.xlane.f32.xlu0 %v1528
    %v1530 = vpop.xlane.xlu0 %1529
    %v1531 = vsel %vm539, %v1462, -inf
    %1532 = vmax.xlane.f32.xlu0 %v1531
    %v1533 = vpop.xlane.xlu0 %1532
    %v1534 = vsel %vm539, %v1510, -inf
    %1535 = vmax.xlane.f32.xlu0 %v1534
    %v1536 = vpop.xlane.xlu0 %1535
    %v1537 = vsel %vm539, %v1513, -inf
    %1538 = vmax.xlane.f32.xlu0 %v1537
    %v1539 = vpop.xlane.xlu0 %1538
    %v1540 = vsub.f32 %v1357, %v1518
    %v1541 = vsub.f32 %v1360, %v1521
    %v1542 = vsub.f32 %v1408, %v1524
    %v1543 = vsub.f32 %v1411, %v1527
    %v1544 = vsub.f32 %v1459, %v1530
    %v1545 = vsub.f32 %v1462, %v1533
    %v1546 = vsub.f32 %v1510, %v1536
    %v1547 = vsub.f32 %v1513, %v1539
    %v1548 = vmul.f32 %v1540, 1.442695
    %v1549 = vpow.pop %v1548
    %v1550 = vmul.f32 %v1541, 1.442695
    %v1551 = vpow.pop %v1550
    %v1552 = vmul.f32 %v1542, 1.442695
    %v1553 = vpow.pop %v1552
    %v1554 = vmul.f32 %v1543, 1.442695
    %v1555 = vpow.pop %v1554
    %v1556 = vmul.f32 %v1544, 1.442695
    %v1557 = vpow.pop %v1556
    %v1558 = vmul.f32 %v1545, 1.442695
    %v1559 = vpow.pop %v1558
    %v1560 = vmul.f32 %v1546, 1.442695
    %v1561 = vpow.pop %v1560
    %v1562 = vmul.f32 %v1547, 1.442695
    %v1563 = vpow.pop %v1562
    %v1564 = vsel %vm539, %v1549, 0.0
    %1565 = vadd.xlane.f32.xlu0 %v1564
    %v1566 = vpop.xlane.xlu0 %1565
    %v1567 = vsel %vm539, %v1551, 0.0
    %1568 = vadd.xlane.f32.xlu0 %v1567
    %v1569 = vpop.xlane.xlu0 %1568
    %v1570 = vsel %vm539, %v1553, 0.0
    %1571 = vadd.xlane.f32.xlu0 %v1570
    %v1572 = vpop.xlane.xlu0 %1571
    %v1573 = vsel %vm539, %v1555, 0.0
    %1574 = vadd.xlane.f32.xlu0 %v1573
    %v1575 = vpop.xlane.xlu0 %1574
    %v1576 = vsel %vm539, %v1557, 0.0
    %1577 = vadd.xlane.f32.xlu0 %v1576
    %v1578 = vpop.xlane.xlu0 %1577
    %v1579 = vsel %vm539, %v1559, 0.0
    %1580 = vadd.xlane.f32.xlu0 %v1579
    %v1581 = vpop.xlane.xlu0 %1580
    %v1582 = vsel %vm539, %v1561, 0.0
    %1583 = vadd.xlane.f32.xlu0 %v1582
    %v1584 = vpop.xlane.xlu0 %1583
    %v1585 = vsel %vm539, %v1563, 0.0
    %1586 = vadd.xlane.f32.xlu0 %v1585
    %v1587 = vpop.xlane.xlu0 %1586
    %v1588 = vrcp.pop %v1566
    %v1589 = vrcp.pop %v1569
    %v1590 = vrcp.pop %v1572
    %v1591 = vrcp.pop %v1575
    %v1592 = vrcp.pop %v1578
    %v1593 = vrcp.pop %v1581
    %v1594 = vrcp.pop %v1584
    %v1595 = vrcp.pop %v1587
    %v1596 = vmul.f32 %v1549, %v1588
    %v1597 = vmul.f32 %v1551, %v1589
    %v1598 = vmul.f32 %v1553, %v1590
    %v1599 = vmul.f32 %v1555, %v1591
    %v1600 = vmul.f32 %v1557, %v1592
    %v1601 = vmul.f32 %v1559, %v1593
    %v1602 = vmul.f32 %v1561, %v1594
    %v1603 = vmul.f32 %v1563, %v1595
    %v1604 = vpack.c.bf16 %v1597, %v1596
    %v1605 = vpack.c.bf16 %v1599, %v1598
    %v1606 = vpack.c.bf16 %v1601, %v1600
    %v1607 = vpack.c.bf16 %v1603, %v1602
    %1608 = vrot.lane.b32.xlu0 %v340, 64
    %v1609 = vpop.permute.xlu0 %1608
    %v1612 = vsel %vm539, %v1604, 0
    %1614 = vmatprep.subr.bf16.mxu0 0
    %1615 = vmatpush1.bf16.msra.mxu0 %v1609
    %1616 = vmatprep.subr.bf16.mxu0 0
    %1617 = vmatpush1.bf16.msra.mxu0 0
    %1618 = vmatprep.subr.bf16.mxu0 0
    %1619 = vmatpush1.bf16.msra.mxu0 0
    %1620 = vmatprep.subr.bf16.mxu0 0
    %1621 = vmatpush1.bf16.msra.mxu0 0
    %1622 = vmatprep.subr.bf16.mxu0 0
    %1623 = vmatpush1.bf16.msra.mxu0 0
    %1624 = vmatprep.subr.bf16.mxu0 0
    %1625 = vmatpush1.bf16.msra.mxu0 0
    %1626 = vmatprep.subr.bf16.mxu0 0
    %1627 = vmatpush1.bf16.msra.mxu0 0
    %1628 = vmatprep.subr.bf16.mxu0 0
    %1629 = vmatpush1.bf16.msra.mxu0 0
    %1630 = vmatprep.subr.bf16.mxu0 0
    %1631 = vmatpush1.bf16.msra.mxu0 0
    %1632 = vmatprep.subr.bf16.mxu0 0
    %1633 = vmatpush1.bf16.msra.mxu0 0
    %1634 = vmatprep.subr.bf16.mxu0 0
    %1635 = vmatpush1.bf16.msra.mxu0 0
    %1636 = vmatprep.subr.bf16.mxu0 0
    %1637 = vmatpush1.bf16.msra.mxu0 0
    %1638 = vmatprep.subr.bf16.mxu0 0
    %1639 = vmatpush1.bf16.msra.mxu0 0
    %1640 = vmatprep.subr.bf16.mxu0 0
    %1641 = vmatpush1.bf16.msra.mxu0 0
    %1642 = vmatprep.subr.bf16.mxu0 0
    %1643 = vmatpush1.bf16.msra.mxu0 0
    %1644 = vmatprep.subr.bf16.mxu0 0
    %1645 = vmatpush1.bf16.msra.mxu0 0
    %1646 = vmatprep.mubr.bf16.mxu0 0
    %1647 = vmatmul.mubr.bf16.gmra.mrb[0].mxu0 %v1612
    %v1648 = vpop.f32.mrb[0].mxu0
    %v1649 = vadd.f32 0.0, %v1648
    %v1650 = vpop.f32.mrb[0].mxu0
    %v1651 = vpop.f32.mrb[0].mxu0
    %v1652 = vadd.f32 0.0, %v1651
    %v1653 = vpop.f32.mrb[0].mxu0
    %1654 = vdwg.mxu0
    %1655 = vrot.lane.b32.xlu0 %v343, 64
    %v1656 = vpop.permute.xlu0 %1655
    %v1659 = vsel %vm539, %v1605, 0
    %1661 = vmatprep.subr.bf16.mxu0 0
    %1662 = vmatpush1.bf16.msra.mxu0 %v1656
    %1663 = vmatprep.subr.bf16.mxu0 0
    %1664 = vmatpush1.bf16.msra.mxu0 0
    %1665 = vmatprep.subr.bf16.mxu0 0
    %1666 = vmatpush1.bf16.msra.mxu0 0
    %1667 = vmatprep.subr.bf16.mxu0 0
    %1668 = vmatpush1.bf16.msra.mxu0 0
    %1669 = vmatprep.subr.bf16.mxu0 0
    %1670 = vmatpush1.bf16.msra.mxu0 0
    %1671 = vmatprep.subr.bf16.mxu0 0
    %1672 = vmatpush1.bf16.msra.mxu0 0
    %1673 = vmatprep.subr.bf16.mxu0 0
    %1674 = vmatpush1.bf16.msra.mxu0 0
    %1675 = vmatprep.subr.bf16.mxu0 0
    %1676 = vmatpush1.bf16.msra.mxu0 0
    %1677 = vmatprep.subr.bf16.mxu0 0
    %1678 = vmatpush1.bf16.msra.mxu0 0
    %1679 = vmatprep.subr.bf16.mxu0 0
    %1680 = vmatpush1.bf16.msra.mxu0 0
    %1681 = vmatprep.subr.bf16.mxu0 0
    %1682 = vmatpush1.bf16.msra.mxu0 0
    %1683 = vmatprep.subr.bf16.mxu0 0
    %1684 = vmatpush1.bf16.msra.mxu0 0
    %1685 = vmatprep.subr.bf16.mxu0 0
    %1686 = vmatpush1.bf16.msra.mxu0 0
    %1687 = vmatprep.subr.bf16.mxu0 0
    %1688 = vmatpush1.bf16.msra.mxu0 0
    %1689 = vmatprep.subr.bf16.mxu0 0
    %1690 = vmatpush1.bf16.msra.mxu0 0
    %1691 = vmatprep.subr.bf16.mxu0 0
    %1692 = vmatpush1.bf16.msra.mxu0 0
    %1693 = vmatprep.mubr.bf16.mxu0 0
    %1694 = vmatmul.mubr.bf16.gmra.mrb[0].mxu0 %v1659
    %v1695 = vpop.f32.mrb[0].mxu0
    %v1696 = vadd.f32 0.0, %v1695
    %v1697 = vpop.f32.mrb[0].mxu0
    %v1698 = vpop.f32.mrb[0].mxu0
    %v1699 = vadd.f32 0.0, %v1698
    %v1700 = vpop.f32.mrb[0].mxu0
    %1701 = vdwg.mxu0
    %1702 = vrot.lane.b32.xlu0 %v346, 64
    %v1703 = vpop.permute.xlu0 %1702
    %v1706 = vsel %vm539, %v1606, 0
    %1708 = vmatprep.subr.bf16.mxu0 0
    %1709 = vmatpush1.bf16.msra.mxu0 %v1703
    %1710 = vmatprep.subr.bf16.mxu0 0
    %1711 = vmatpush1.bf16.msra.mxu0 0
    %1712 = vmatprep.subr.bf16.mxu0 0
    %1713 = vmatpush1.bf16.msra.mxu0 0
    %1714 = vmatprep.subr.bf16.mxu0 0
    %1715 = vmatpush1.bf16.msra.mxu0 0
    %1716 = vmatprep.subr.bf16.mxu0 0
    %1717 = vmatpush1.bf16.msra.mxu0 0
    %1718 = vmatprep.subr.bf16.mxu0 0
    %1719 = vmatpush1.bf16.msra.mxu0 0
    %1720 = vmatprep.subr.bf16.mxu0 0
    %1721 = vmatpush1.bf16.msra.mxu0 0
    %1722 = vmatprep.subr.bf16.mxu0 0
    %1723 = vmatpush1.bf16.msra.mxu0 0
    %1724 = vmatprep.subr.bf16.mxu0 0
    %1725 = vmatpush1.bf16.msra.mxu0 0
    %1726 = vmatprep.subr.bf16.mxu0 0
    %1727 = vmatpush1.bf16.msra.mxu0 0
    %1728 = vmatprep.subr.bf16.mxu0 0
    %1729 = vmatpush1.bf16.msra.mxu0 0
    %1730 = vmatprep.subr.bf16.mxu0 0
    %1731 = vmatpush1.bf16.msra.mxu0 0
    %1732 = vmatprep.subr.bf16.mxu0 0
    %1733 = vmatpush1.bf16.msra.mxu0 0
    %1734 = vmatprep.subr.bf16.mxu0 0
    %1735 = vmatpush1.bf16.msra.mxu0 0
    %1736 = vmatprep.subr.bf16.mxu0 0
    %1737 = vmatpush1.bf16.msra.mxu0 0
    %1738 = vmatprep.subr.bf16.mxu0 0
    %1739 = vmatpush1.bf16.msra.mxu0 0
    %1740 = vmatprep.mubr.bf16.mxu0 0
    %1741 = vmatmul.mubr.bf16.gmra.mrb[0].mxu0 %v1706
    %v1742 = vpop.f32.mrb[0].mxu0
    %v1743 = vadd.f32 0.0, %v1742
    %v1744 = vpop.f32.mrb[0].mxu0
    %v1745 = vpop.f32.mrb[0].mxu0
    %v1746 = vadd.f32 0.0, %v1745
    %v1747 = vpop.f32.mrb[0].mxu0
    %1748 = vdwg.mxu0
    %1749 = vrot.lane.b32.xlu0 %v349, 64
    %v1750 = vpop.permute.xlu0 %1749
    %v1753 = vsel %vm539, %v1607, 0
    %1755 = vmatprep.subr.bf16.mxu0 0
    %1756 = vmatpush1.bf16.msra.mxu0 %v1750
    %1757 = vmatprep.subr.bf16.mxu0 0
    %1758 = vmatpush1.bf16.msra.mxu0 0
    %1759 = vmatprep.subr.bf16.mxu0 0
    %1760 = vmatpush1.bf16.msra.mxu0 0
    %1761 = vmatprep.subr.bf16.mxu0 0
    %1762 = vmatpush1.bf16.msra.mxu0 0
    %1763 = vmatprep.subr.bf16.mxu0 0
    %1764 = vmatpush1.bf16.msra.mxu0 0
    %1765 = vmatprep.subr.bf16.mxu0 0
    %1766 = vmatpush1.bf16.msra.mxu0 0
    %1767 = vmatprep.subr.bf16.mxu0 0
    %1768 = vmatpush1.bf16.msra.mxu0 0
    %1769 = vmatprep.subr.bf16.mxu0 0
    %1770 = vmatpush1.bf16.msra.mxu0 0
    %1771 = vmatprep.subr.bf16.mxu0 0
    %1772 = vmatpush1.bf16.msra.mxu0 0
    %1773 = vmatprep.subr.bf16.mxu0 0
    %1774 = vmatpush1.bf16.msra.mxu0 0
    %1775 = vmatprep.subr.bf16.mxu0 0
    %1776 = vmatpush1.bf16.msra.mxu0 0
    %1777 = vmatprep.subr.bf16.mxu0 0
    %1778 = vmatpush1.bf16.msra.mxu0 0
    %1779 = vmatprep.subr.bf16.mxu0 0
    %1780 = vmatpush1.bf16.msra.mxu0 0
    %1781 = vmatprep.subr.bf16.mxu0 0
    %1782 = vmatpush1.bf16.msra.mxu0 0
    %1783 = vmatprep.subr.bf16.mxu0 0
    %1784 = vmatpush1.bf16.msra.mxu0 0
    %1785 = vmatprep.subr.bf16.mxu0 0
    %1786 = vmatpush1.bf16.msra.mxu0 0
    %1787 = vmatprep.mubr.bf16.mxu0 0
    %1788 = vmatmul.mubr.bf16.gmra.mrb[0].mxu0 %v1753
    %v1789 = vpop.f32.mrb[0].mxu0
    %v1790 = vadd.f32 0.0, %v1789
    %v1791 = vpop.f32.mrb[0].mxu0
    %v1792 = vpop.f32.mrb[0].mxu0
    %v1793 = vadd.f32 0.0, %v1792
    %v1794 = vpop.f32.mrb[0].mxu0
    %1795 = vdwg.mxu0
    %v1796 = vpack.c.bf16 %v1652, %v1649
    %v1797 = vpack.c.bf16 %v1699, %v1696
    %v1798 = vpack.c.bf16 %v1746, %v1743
    %v1799 = vpack.c.bf16 %v1793, %v1790
    %1800 = vrot.lane.b32.xlu0 %v338, 32
    %v1801 = vpop.permute.xlu0 %1800
    %1802 = vrot.lane.b32.xlu0 %v339, 32
    %v1803 = vpop.permute.xlu0 %1802
    %v1805 = vsel %vm350, %v1801, 0
    %v1808 = vsel %vm350, %v1803, 0
    %1810 = vmatprep.subr.bf16.mxu0 0
    %1811 = vmatpush1.bf16.xpose.msra.mxu0 %v1808
    %1812 = vmatprep.subr.bf16.mxu0 0
    %1813 = vmatpush1.bf16.xpose.msra.mxu0 0
    %1814 = vmatprep.subr.bf16.mxu0 0
    %1815 = vmatpush1.bf16.xpose.msra.mxu0 0
    %1816 = vmatprep.subr.bf16.mxu0 0
    %1817 = vmatpush1.bf16.xpose.msra.mxu0 0
    %1818 = vmatprep.subr.bf16.mxu0 0
    %1819 = vmatpush1.bf16.xpose.msra.mxu0 0
    %1820 = vmatprep.subr.bf16.mxu0 0
    %1821 = vmatpush1.bf16.xpose.msra.mxu0 0
    %1822 = vmatprep.subr.bf16.mxu0 0
    %1823 = vmatpush1.bf16.xpose.msra.mxu0 0
    %1824 = vmatprep.subr.bf16.mxu0 0
    %1825 = vmatpush1.bf16.xpose.msra.mxu0 0
    %1826 = vmatprep.subr.bf16.mxu0 0
    %1827 = vmatpush1.bf16.xpose.msra.mxu0 0
    %1828 = vmatprep.subr.bf16.mxu0 0
    %1829 = vmatpush1.bf16.xpose.msra.mxu0 0
    %1830 = vmatprep.subr.bf16.mxu0 0
    %1831 = vmatpush1.bf16.xpose.msra.mxu0 0
    %1832 = vmatprep.subr.bf16.mxu0 0
    %1833 = vmatpush1.bf16.xpose.msra.mxu0 0
    %1834 = vmatprep.subr.bf16.mxu0 0
    %1835 = vmatpush1.bf16.xpose.msra.mxu0 0
    %1836 = vmatprep.subr.bf16.mxu0 0
    %1837 = vmatpush1.bf16.xpose.msra.mxu0 0
    %1838 = vmatprep.subr.bf16.mxu0 0
    %1839 = vmatpush1.bf16.xpose.msra.mxu0 0
    %1840 = vmatprep.subr.bf16.mxu0 0
    %1841 = vmatpush1.bf16.xpose.msra.mxu0 0
    %1842 = vmatprep.mubr.bf16.mxu0 0
    %1843 = vmatmul.mubr.bf16.gmra.mrb[0].mxu0 %v1805
    %v1844 = vpop.f32.mrb[0].mxu0
    %v1845 = vadd.f32 0.0, %v1844
    %v1846 = vpop.f32.mrb[0].mxu0
    %v1847 = vpop.f32.mrb[0].mxu0
    %v1848 = vadd.f32 0.0, %v1847
    %v1849 = vpop.f32.mrb[0].mxu0
    %1850 = vdwg.mxu0
    %1851 = vrot.lane.b32.xlu0 %v341, 32
    %v1852 = vpop.permute.xlu0 %1851
    %1853 = vrot.lane.b32.xlu0 %v342, 32
    %v1854 = vpop.permute.xlu0 %1853
    %v1856 = vsel %vm350, %v1852, 0
    %v1859 = vsel %vm350, %v1854, 0
    %1861 = vmatprep.subr.bf16.mxu0 0
    %1862 = vmatpush1.bf16.xpose.msra.mxu0 %v1859
    %1863 = vmatprep.subr.bf16.mxu0 0
    %1864 = vmatpush1.bf16.xpose.msra.mxu0 0
    %1865 = vmatprep.subr.bf16.mxu0 0
    %1866 = vmatpush1.bf16.xpose.msra.mxu0 0
    %1867 = vmatprep.subr.bf16.mxu0 0
    %1868 = vmatpush1.bf16.xpose.msra.mxu0 0
    %1869 = vmatprep.subr.bf16.mxu0 0
    %1870 = vmatpush1.bf16.xpose.msra.mxu0 0
    %1871 = vmatprep.subr.bf16.mxu0 0
    %1872 = vmatpush1.bf16.xpose.msra.mxu0 0
    %1873 = vmatprep.subr.bf16.mxu0 0
    %1874 = vmatpush1.bf16.xpose.msra.mxu0 0
    %1875 = vmatprep.subr.bf16.mxu0 0
    %1876 = vmatpush1.bf16.xpose.msra.mxu0 0
    %1877 = vmatprep.subr.bf16.mxu0 0
    %1878 = vmatpush1.bf16.xpose.msra.mxu0 0
    %1879 = vmatprep.subr.bf16.mxu0 0
    %1880 = vmatpush1.bf16.xpose.msra.mxu0 0
    %1881 = vmatprep.subr.bf16.mxu0 0
    %1882 = vmatpush1.bf16.xpose.msra.mxu0 0
    %1883 = vmatprep.subr.bf16.mxu0 0
    %1884 = vmatpush1.bf16.xpose.msra.mxu0 0
    %1885 = vmatprep.subr.bf16.mxu0 0
    %1886 = vmatpush1.bf16.xpose.msra.mxu0 0
    %1887 = vmatprep.subr.bf16.mxu0 0
    %1888 = vmatpush1.bf16.xpose.msra.mxu0 0
    %1889 = vmatprep.subr.bf16.mxu0 0
    %1890 = vmatpush1.bf16.xpose.msra.mxu0 0
    %1891 = vmatprep.subr.bf16.mxu0 0
    %1892 = vmatpush1.bf16.xpose.msra.mxu0 0
    %1893 = vmatprep.mubr.bf16.mxu0 0
    %1894 = vmatmul.mubr.bf16.gmra.mrb[0].mxu0 %v1856
    %v1895 = vpop.f32.mrb[0].mxu0
    %v1896 = vadd.f32 0.0, %v1895
    %v1897 = vpop.f32.mrb[0].mxu0
    %v1898 = vpop.f32.mrb[0].mxu0
    %v1899 = vadd.f32 0.0, %v1898
    %v1900 = vpop.f32.mrb[0].mxu0
    %1901 = vdwg.mxu0
    %1902 = vrot.lane.b32.xlu0 %v344, 32
    %v1903 = vpop.permute.xlu0 %1902
    %1904 = vrot.lane.b32.xlu0 %v345, 32
    %v1905 = vpop.permute.xlu0 %1904
    %v1907 = vsel %vm350, %v1903, 0
    %v1910 = vsel %vm350, %v1905, 0
    %1912 = vmatprep.subr.bf16.mxu0 0
    %1913 = vmatpush1.bf16.xpose.msra.mxu0 %v1910
    %1914 = vmatprep.subr.bf16.mxu0 0
    %1915 = vmatpush1.bf16.xpose.msra.mxu0 0
    %1916 = vmatprep.subr.bf16.mxu0 0
    %1917 = vmatpush1.bf16.xpose.msra.mxu0 0
    %1918 = vmatprep.subr.bf16.mxu0 0
    %1919 = vmatpush1.bf16.xpose.msra.mxu0 0
    %1920 = vmatprep.subr.bf16.mxu0 0
    %1921 = vmatpush1.bf16.xpose.msra.mxu0 0
    %1922 = vmatprep.subr.bf16.mxu0 0
    %1923 = vmatpush1.bf16.xpose.msra.mxu0 0
    %1924 = vmatprep.subr.bf16.mxu0 0
    %1925 = vmatpush1.bf16.xpose.msra.mxu0 0
    %1926 = vmatprep.subr.bf16.mxu0 0
    %1927 = vmatpush1.bf16.xpose.msra.mxu0 0
    %1928 = vmatprep.subr.bf16.mxu0 0
    %1929 = vmatpush1.bf16.xpose.msra.mxu0 0
    %1930 = vmatprep.subr.bf16.mxu0 0
    %1931 = vmatpush1.bf16.xpose.msra.mxu0 0
    %1932 = vmatprep.subr.bf16.mxu0 0
    %1933 = vmatpush1.bf16.xpose.msra.mxu0 0
    %1934 = vmatprep.subr.bf16.mxu0 0
    %1935 = vmatpush1.bf16.xpose.msra.mxu0 0
    %1936 = vmatprep.subr.bf16.mxu0 0
    %1937 = vmatpush1.bf16.xpose.msra.mxu0 0
    %1938 = vmatprep.subr.bf16.mxu0 0
    %1939 = vmatpush1.bf16.xpose.msra.mxu0 0
    %1940 = vmatprep.subr.bf16.mxu0 0
    %1941 = vmatpush1.bf16.xpose.msra.mxu0 0
    %1942 = vmatprep.subr.bf16.mxu0 0
    %1943 = vmatpush1.bf16.xpose.msra.mxu0 0
    %1944 = vmatprep.mubr.bf16.mxu0 0
    %1945 = vmatmul.mubr.bf16.gmra.mrb[0].mxu0 %v1907
    %v1946 = vpop.f32.mrb[0].mxu0
    %v1947 = vadd.f32 0.0, %v1946
    %v1948 = vpop.f32.mrb[0].mxu0
    %v1949 = vpop.f32.mrb[0].mxu0
    %v1950 = vadd.f32 0.0, %v1949
    %v1951 = vpop.f32.mrb[0].mxu0
    %1952 = vdwg.mxu0
    %1953 = vrot.lane.b32.xlu0 %v347, 32
    %v1954 = vpop.permute.xlu0 %1953
    %1955 = vrot.lane.b32.xlu0 %v348, 32
    %v1956 = vpop.permute.xlu0 %1955
    %v1958 = vsel %vm350, %v1954, 0
    %v1961 = vsel %vm350, %v1956, 0
    %1963 = vmatprep.subr.bf16.mxu0 0
    %1964 = vmatpush1.bf16.xpose.msra.mxu0 %v1961
    %1965 = vmatprep.subr.bf16.mxu0 0
    %1966 = vmatpush1.bf16.xpose.msra.mxu0 0
    %1967 = vmatprep.subr.bf16.mxu0 0
    %1968 = vmatpush1.bf16.xpose.msra.mxu0 0
    %1969 = vmatprep.subr.bf16.mxu0 0
    %1970 = vmatpush1.bf16.xpose.msra.mxu0 0
    %1971 = vmatprep.subr.bf16.mxu0 0
    %1972 = vmatpush1.bf16.xpose.msra.mxu0 0
    %1973 = vmatprep.subr.bf16.mxu0 0
    %1974 = vmatpush1.bf16.xpose.msra.mxu0 0
    %1975 = vmatprep.subr.bf16.mxu0 0
    %1976 = vmatpush1.bf16.xpose.msra.mxu0 0
    %1977 = vmatprep.subr.bf16.mxu0 0
    %1978 = vmatpush1.bf16.xpose.msra.mxu0 0
    %1979 = vmatprep.subr.bf16.mxu0 0
    %1980 = vmatpush1.bf16.xpose.msra.mxu0 0
    %1981 = vmatprep.subr.bf16.mxu0 0
    %1982 = vmatpush1.bf16.xpose.msra.mxu0 0
    %1983 = vmatprep.subr.bf16.mxu0 0
    %1984 = vmatpush1.bf16.xpose.msra.mxu0 0
    %1985 = vmatprep.subr.bf16.mxu0 0
    %1986 = vmatpush1.bf16.xpose.msra.mxu0 0
    %1987 = vmatprep.subr.bf16.mxu0 0
    %1988 = vmatpush1.bf16.xpose.msra.mxu0 0
    %1989 = vmatprep.subr.bf16.mxu0 0
    %1990 = vmatpush1.bf16.xpose.msra.mxu0 0
    %1991 = vmatprep.subr.bf16.mxu0 0
    %1992 = vmatpush1.bf16.xpose.msra.mxu0 0
    %1993 = vmatprep.subr.bf16.mxu0 0
    %1994 = vmatpush1.bf16.xpose.msra.mxu0 0
    %1995 = vmatprep.mubr.bf16.mxu0 0
    %1996 = vmatmul.mubr.bf16.gmra.mrb[0].mxu0 %v1958
    %v1997 = vpop.f32.mrb[0].mxu0
    %v1998 = vadd.f32 0.0, %v1997
    %v1999 = vpop.f32.mrb[0].mxu0
    %v2000 = vpop.f32.mrb[0].mxu0
    %v2001 = vadd.f32 0.0, %v2000
    %v2002 = vpop.f32.mrb[0].mxu0
    %2003 = vdwg.mxu0
    %v2004 = vsel %vm539, %v1845, -inf
    %2005 = vmax.xlane.f32.xlu0 %v2004
    %v2006 = vpop.xlane.xlu0 %2005
    %v2007 = vsel %vm539, %v1848, -inf
    %2008 = vmax.xlane.f32.xlu0 %v2007
    %v2009 = vpop.xlane.xlu0 %2008
    %v2010 = vsel %vm539, %v1896, -inf
    %2011 = vmax.xlane.f32.xlu0 %v2010
    %v2012 = vpop.xlane.xlu0 %2011
    %v2013 = vsel %vm539, %v1899, -inf
    %2014 = vmax.xlane.f32.xlu0 %v2013
    %v2015 = vpop.xlane.xlu0 %2014
    %v2016 = vsel %vm539, %v1947, -inf
    %2017 = vmax.xlane.f32.xlu0 %v2016
    %v2018 = vpop.xlane.xlu0 %2017
    %v2019 = vsel %vm539, %v1950, -inf
    %2020 = vmax.xlane.f32.xlu0 %v2019
    %v2021 = vpop.xlane.xlu0 %2020
    %v2022 = vsel %vm539, %v1998, -inf
    %2023 = vmax.xlane.f32.xlu0 %v2022
    %v2024 = vpop.xlane.xlu0 %2023
    %v2025 = vsel %vm539, %v2001, -inf
    %2026 = vmax.xlane.f32.xlu0 %v2025
    %v2027 = vpop.xlane.xlu0 %2026
    %v2028 = vsub.f32 %v1845, %v2006
    %v2029 = vsub.f32 %v1848, %v2009
    %v2030 = vsub.f32 %v1896, %v2012
    %v2031 = vsub.f32 %v1899, %v2015
    %v2032 = vsub.f32 %v1947, %v2018
    %v2033 = vsub.f32 %v1950, %v2021
    %v2034 = vsub.f32 %v1998, %v2024
    %v2035 = vsub.f32 %v2001, %v2027
    %v2036 = vmul.f32 %v2028, 1.442695
    %v2037 = vpow.pop %v2036
    %v2038 = vmul.f32 %v2029, 1.442695
    %v2039 = vpow.pop %v2038
    %v2040 = vmul.f32 %v2030, 1.442695
    %v2041 = vpow.pop %v2040
    %v2042 = vmul.f32 %v2031, 1.442695
    %v2043 = vpow.pop %v2042
    %v2044 = vmul.f32 %v2032, 1.442695
    %v2045 = vpow.pop %v2044
    %v2046 = vmul.f32 %v2033, 1.442695
    %v2047 = vpow.pop %v2046
    %v2048 = vmul.f32 %v2034, 1.442695
    %v2049 = vpow.pop %v2048
    %v2050 = vmul.f32 %v2035, 1.442695
    %v2051 = vpow.pop %v2050
    %v2052 = vsel %vm539, %v2037, 0.0
    %2053 = vadd.xlane.f32.xlu0 %v2052
    %v2054 = vpop.xlane.xlu0 %2053
    %v2055 = vsel %vm539, %v2039, 0.0
    %2056 = vadd.xlane.f32.xlu0 %v2055
    %v2057 = vpop.xlane.xlu0 %2056
    %v2058 = vsel %vm539, %v2041, 0.0
    %2059 = vadd.xlane.f32.xlu0 %v2058
    %v2060 = vpop.xlane.xlu0 %2059
    %v2061 = vsel %vm539, %v2043, 0.0
    %2062 = vadd.xlane.f32.xlu0 %v2061
    %v2063 = vpop.xlane.xlu0 %2062
    %v2064 = vsel %vm539, %v2045, 0.0
    %2065 = vadd.xlane.f32.xlu0 %v2064
    %v2066 = vpop.xlane.xlu0 %2065
    %v2067 = vsel %vm539, %v2047, 0.0
    %2068 = vadd.xlane.f32.xlu0 %v2067
    %v2069 = vpop.xlane.xlu0 %2068
    %v2070 = vsel %vm539, %v2049, 0.0
    %2071 = vadd.xlane.f32.xlu0 %v2070
    %v2072 = vpop.xlane.xlu0 %2071
    %v2073 = vsel %vm539, %v2051, 0.0
    %2074 = vadd.xlane.f32.xlu0 %v2073
    %v2075 = vpop.xlane.xlu0 %2074
    %v2076 = vrcp.pop %v2054
    %v2077 = vrcp.pop %v2057
    %v2078 = vrcp.pop %v2060
    %v2079 = vrcp.pop %v2063
    %v2080 = vrcp.pop %v2066
    %v2081 = vrcp.pop %v2069
    %v2082 = vrcp.pop %v2072
    %v2083 = vrcp.pop %v2075
    %v2084 = vmul.f32 %v2037, %v2076
    %v2085 = vmul.f32 %v2039, %v2077
    %v2086 = vmul.f32 %v2041, %v2078
    %v2087 = vmul.f32 %v2043, %v2079
    %v2088 = vmul.f32 %v2045, %v2080
    %v2089 = vmul.f32 %v2047, %v2081
    %v2090 = vmul.f32 %v2049, %v2082
    %v2091 = vmul.f32 %v2051, %v2083
    %v2092 = vpack.c.bf16 %v2085, %v2084
    %v2093 = vpack.c.bf16 %v2087, %v2086
    %v2094 = vpack.c.bf16 %v2089, %v2088
    %v2095 = vpack.c.bf16 %v2091, %v2090
    %2096 = vrot.lane.b32.xlu0 %v340, 32
    %v2097 = vpop.permute.xlu0 %2096
    %v2100 = vsel %vm539, %v2092, 0
    %2102 = vmatprep.subr.bf16.mxu0 0
    %2103 = vmatpush1.bf16.msra.mxu0 %v2097
    %2104 = vmatprep.subr.bf16.mxu0 0
    %2105 = vmatpush1.bf16.msra.mxu0 0
    %2106 = vmatprep.subr.bf16.mxu0 0
    %2107 = vmatpush1.bf16.msra.mxu0 0
    %2108 = vmatprep.subr.bf16.mxu0 0
    %2109 = vmatpush1.bf16.msra.mxu0 0
    %2110 = vmatprep.subr.bf16.mxu0 0
    %2111 = vmatpush1.bf16.msra.mxu0 0
    %2112 = vmatprep.subr.bf16.mxu0 0
    %2113 = vmatpush1.bf16.msra.mxu0 0
    %2114 = vmatprep.subr.bf16.mxu0 0
    %2115 = vmatpush1.bf16.msra.mxu0 0
    %2116 = vmatprep.subr.bf16.mxu0 0
    %2117 = vmatpush1.bf16.msra.mxu0 0
    %2118 = vmatprep.subr.bf16.mxu0 0
    %2119 = vmatpush1.bf16.msra.mxu0 0
    %2120 = vmatprep.subr.bf16.mxu0 0
    %2121 = vmatpush1.bf16.msra.mxu0 0
    %2122 = vmatprep.subr.bf16.mxu0 0
    %2123 = vmatpush1.bf16.msra.mxu0 0
    %2124 = vmatprep.subr.bf16.mxu0 0
    %2125 = vmatpush1.bf16.msra.mxu0 0
    %2126 = vmatprep.subr.bf16.mxu0 0
    %2127 = vmatpush1.bf16.msra.mxu0 0
    %2128 = vmatprep.subr.bf16.mxu0 0
    %2129 = vmatpush1.bf16.msra.mxu0 0
    %2130 = vmatprep.subr.bf16.mxu0 0
    %2131 = vmatpush1.bf16.msra.mxu0 0
    %2132 = vmatprep.subr.bf16.mxu0 0
    %2133 = vmatpush1.bf16.msra.mxu0 0
    %2134 = vmatprep.mubr.bf16.mxu0 0
    %2135 = vmatmul.mubr.bf16.gmra.mrb[0].mxu0 %v2100
    %v2136 = vpop.f32.mrb[0].mxu0
    %v2137 = vadd.f32 0.0, %v2136
    %v2138 = vpop.f32.mrb[0].mxu0
    %v2139 = vpop.f32.mrb[0].mxu0
    %v2140 = vadd.f32 0.0, %v2139
    %v2141 = vpop.f32.mrb[0].mxu0
    %2142 = vdwg.mxu0
    %2143 = vrot.lane.b32.xlu0 %v343, 32
    %v2144 = vpop.permute.xlu0 %2143
    %v2147 = vsel %vm539, %v2093, 0
    %2149 = vmatprep.subr.bf16.mxu0 0
    %2150 = vmatpush1.bf16.msra.mxu0 %v2144
    %2151 = vmatprep.subr.bf16.mxu0 0
    %2152 = vmatpush1.bf16.msra.mxu0 0
    %2153 = vmatprep.subr.bf16.mxu0 0
    %2154 = vmatpush1.bf16.msra.mxu0 0
    %2155 = vmatprep.subr.bf16.mxu0 0
    %2156 = vmatpush1.bf16.msra.mxu0 0
    %2157 = vmatprep.subr.bf16.mxu0 0
    %2158 = vmatpush1.bf16.msra.mxu0 0
    %2159 = vmatprep.subr.bf16.mxu0 0
    %2160 = vmatpush1.bf16.msra.mxu0 0
    %2161 = vmatprep.subr.bf16.mxu0 0
    %2162 = vmatpush1.bf16.msra.mxu0 0
    %2163 = vmatprep.subr.bf16.mxu0 0
    %2164 = vmatpush1.bf16.msra.mxu0 0
    %2165 = vmatprep.subr.bf16.mxu0 0
    %2166 = vmatpush1.bf16.msra.mxu0 0
    %2167 = vmatprep.subr.bf16.mxu0 0
    %2168 = vmatpush1.bf16.msra.mxu0 0
    %2169 = vmatprep.subr.bf16.mxu0 0
    %2170 = vmatpush1.bf16.msra.mxu0 0
    %2171 = vmatprep.subr.bf16.mxu0 0
    %2172 = vmatpush1.bf16.msra.mxu0 0
    %2173 = vmatprep.subr.bf16.mxu0 0
    %2174 = vmatpush1.bf16.msra.mxu0 0
    %2175 = vmatprep.subr.bf16.mxu0 0
    %2176 = vmatpush1.bf16.msra.mxu0 0
    %2177 = vmatprep.subr.bf16.mxu0 0
    %2178 = vmatpush1.bf16.msra.mxu0 0
    %2179 = vmatprep.subr.bf16.mxu0 0
    %2180 = vmatpush1.bf16.msra.mxu0 0
    %2181 = vmatprep.mubr.bf16.mxu0 0
    %2182 = vmatmul.mubr.bf16.gmra.mrb[0].mxu0 %v2147
    %v2183 = vpop.f32.mrb[0].mxu0
    %v2184 = vadd.f32 0.0, %v2183
    %v2185 = vpop.f32.mrb[0].mxu0
    %v2186 = vpop.f32.mrb[0].mxu0
    %v2187 = vadd.f32 0.0, %v2186
    %v2188 = vpop.f32.mrb[0].mxu0
    %2189 = vdwg.mxu0
    %2190 = vrot.lane.b32.xlu0 %v346, 32
    %v2191 = vpop.permute.xlu0 %2190
    %v2194 = vsel %vm539, %v2094, 0
    %2196 = vmatprep.subr.bf16.mxu0 0
    %2197 = vmatpush1.bf16.msra.mxu0 %v2191
    %2198 = vmatprep.subr.bf16.mxu0 0
    %2199 = vmatpush1.bf16.msra.mxu0 0
    %2200 = vmatprep.subr.bf16.mxu0 0
    %2201 = vmatpush1.bf16.msra.mxu0 0
    %2202 = vmatprep.subr.bf16.mxu0 0
    %2203 = vmatpush1.bf16.msra.mxu0 0
    %2204 = vmatprep.subr.bf16.mxu0 0
    %2205 = vmatpush1.bf16.msra.mxu0 0
    %2206 = vmatprep.subr.bf16.mxu0 0
    %2207 = vmatpush1.bf16.msra.mxu0 0
    %2208 = vmatprep.subr.bf16.mxu0 0
    %2209 = vmatpush1.bf16.msra.mxu0 0
    %2210 = vmatprep.subr.bf16.mxu0 0
    %2211 = vmatpush1.bf16.msra.mxu0 0
    %2212 = vmatprep.subr.bf16.mxu0 0
    %2213 = vmatpush1.bf16.msra.mxu0 0
    %2214 = vmatprep.subr.bf16.mxu0 0
    %2215 = vmatpush1.bf16.msra.mxu0 0
    %2216 = vmatprep.subr.bf16.mxu0 0
    %2217 = vmatpush1.bf16.msra.mxu0 0
    %2218 = vmatprep.subr.bf16.mxu0 0
    %2219 = vmatpush1.bf16.msra.mxu0 0
    %2220 = vmatprep.subr.bf16.mxu0 0
    %2221 = vmatpush1.bf16.msra.mxu0 0
    %2222 = vmatprep.subr.bf16.mxu0 0
    %2223 = vmatpush1.bf16.msra.mxu0 0
    %2224 = vmatprep.subr.bf16.mxu0 0
    %2225 = vmatpush1.bf16.msra.mxu0 0
    %2226 = vmatprep.subr.bf16.mxu0 0
    %2227 = vmatpush1.bf16.msra.mxu0 0
    %2228 = vmatprep.mubr.bf16.mxu0 0
    %2229 = vmatmul.mubr.bf16.gmra.mrb[0].mxu0 %v2194
    %v2230 = vpop.f32.mrb[0].mxu0
    %v2231 = vadd.f32 0.0, %v2230
    %v2232 = vpop.f32.mrb[0].mxu0
    %v2233 = vpop.f32.mrb[0].mxu0
    %v2234 = vadd.f32 0.0, %v2233
    %v2235 = vpop.f32.mrb[0].mxu0
    %2236 = vdwg.mxu0
    %2237 = vrot.lane.b32.xlu0 %v349, 32
    %v2238 = vpop.permute.xlu0 %2237
    %v2241 = vsel %vm539, %v2095, 0
    %2243 = vmatprep.subr.bf16.mxu0 0
    %2244 = vmatpush1.bf16.msra.mxu0 %v2238
    %2245 = vmatprep.subr.bf16.mxu0 0
    %2246 = vmatpush1.bf16.msra.mxu0 0
    %2247 = vmatprep.subr.bf16.mxu0 0
    %2248 = vmatpush1.bf16.msra.mxu0 0
    %2249 = vmatprep.subr.bf16.mxu0 0
    %2250 = vmatpush1.bf16.msra.mxu0 0
    %2251 = vmatprep.subr.bf16.mxu0 0
    %2252 = vmatpush1.bf16.msra.mxu0 0
    %2253 = vmatprep.subr.bf16.mxu0 0
    %2254 = vmatpush1.bf16.msra.mxu0 0
    %2255 = vmatprep.subr.bf16.mxu0 0
    %2256 = vmatpush1.bf16.msra.mxu0 0
    %2257 = vmatprep.subr.bf16.mxu0 0
    %2258 = vmatpush1.bf16.msra.mxu0 0
    %2259 = vmatprep.subr.bf16.mxu0 0
    %2260 = vmatpush1.bf16.msra.mxu0 0
    %2261 = vmatprep.subr.bf16.mxu0 0
    %2262 = vmatpush1.bf16.msra.mxu0 0
    %2263 = vmatprep.subr.bf16.mxu0 0
    %2264 = vmatpush1.bf16.msra.mxu0 0
    %2265 = vmatprep.subr.bf16.mxu0 0
    %2266 = vmatpush1.bf16.msra.mxu0 0
    %2267 = vmatprep.subr.bf16.mxu0 0
    %2268 = vmatpush1.bf16.msra.mxu0 0
    %2269 = vmatprep.subr.bf16.mxu0 0
    %2270 = vmatpush1.bf16.msra.mxu0 0
    %2271 = vmatprep.subr.bf16.mxu0 0
    %2272 = vmatpush1.bf16.msra.mxu0 0
    %2273 = vmatprep.subr.bf16.mxu0 0
    %2274 = vmatpush1.bf16.msra.mxu0 0
    %2275 = vmatprep.mubr.bf16.mxu0 0
    %2276 = vmatmul.mubr.bf16.gmra.mrb[0].mxu0 %v2241
    %v2277 = vpop.f32.mrb[0].mxu0
    %v2278 = vadd.f32 0.0, %v2277
    %v2279 = vpop.f32.mrb[0].mxu0
    %v2280 = vpop.f32.mrb[0].mxu0
    %v2281 = vadd.f32 0.0, %v2280
    %v2282 = vpop.f32.mrb[0].mxu0
    %2283 = vdwg.mxu0
    %v2284 = vpack.c.bf16 %v2140, %v2137
    %v2285 = vpack.c.bf16 %v2187, %v2184
    %v2286 = vpack.c.bf16 %v2234, %v2231
    %v2287 = vpack.c.bf16 %v2281, %v2278
    %2292 = vrot.lane.b32.xlu0 %v1308, 32
    %v2293 = vpop.permute.xlu0 %2292
    %2294 = vrot.lane.b32.xlu0 %v1309, 32
    %v2295 = vpop.permute.xlu0 %2294
    %2296 = vrot.lane.b32.xlu0 %v1310, 32
    %v2297 = vpop.permute.xlu0 %2296
    %2298 = vrot.lane.b32.xlu0 %v1311, 32
    %v2299 = vpop.permute.xlu0 %2298
    %2304 = vrot.lane.b32.xlu0 %v1796, 64
    %v2305 = vpop.permute.xlu0 %2304
    %2306 = vrot.lane.b32.xlu0 %v1797, 64
    %v2307 = vpop.permute.xlu0 %2306
    %2308 = vrot.lane.b32.xlu0 %v1798, 64
    %v2309 = vpop.permute.xlu0 %2308
    %2310 = vrot.lane.b32.xlu0 %v1799, 64
    %v2311 = vpop.permute.xlu0 %2310
    %2316 = vrot.lane.b32.xlu0 %v2284, 96
    %v2317 = vpop.permute.xlu0 %2316
    %2318 = vrot.lane.b32.xlu0 %v2285, 96
    %v2319 = vpop.permute.xlu0 %2318
    %2320 = vrot.lane.b32.xlu0 %v2286, 96
    %v2321 = vpop.permute.xlu0 %2320
    %2322 = vrot.lane.b32.xlu0 %v2287, 96
    %v2323 = vpop.permute.xlu0 %2322
    %v2326 = vsel %vm350, %v808, %v2293
    %v2329 = vsel %vm350, %v809, %v2295
    %v2332 = vsel %vm350, %v810, %v2297
    %v2335 = vsel %vm350, %v811, %v2299
    %vm2336 = vcmask 523264
    %v2338 = vsel %vm2336, %v2326, %v2305
    %v2340 = vsel %vm2336, %v2329, %v2307
    %v2342 = vsel %vm2336, %v2332, %v2309
    %v2344 = vsel %vm2336, %v2335, %v2311
    %v2346 = vsel %vm187, %v2338, %v2317
    %v2349 = vsel %vm187, %v2340, %v2319
    %v2352 = vsel %vm187, %v2342, %v2321
    %v2355 = vsel %vm187, %v2344, %v2323
    %v2357 = vld [vmem:[%s3] sm:$0xf]
    %v2358 = vld [vmem:[%s3 + $0x4] sm:$0xf]
    %v2359 = vld [vmem:[%s3 + $0x8] sm:$0xf]
    %v2360 = vld [vmem:[%s3 + $0xc] sm:$0xf]
    %v2361 = vld [vmem:[%s3 + $0x10] sm:$0xf]
    %v2362 = vld [vmem:[%s3 + $0x14] sm:$0xf]
    %v2363 = vld [vmem:[%s3 + $0x18] sm:$0xf]
    %v2364 = vld [vmem:[%s3 + $0x1c] sm:$0xf]
    %v2365 = vld [vmem:[%s3 + $0x20] sm:$0xf]
    %v2366 = vld [vmem:[%s3 + $0x24] sm:$0xf]
    %v2367 = vld [vmem:[%s3 + $0x28] sm:$0xf]
    %v2368 = vld [vmem:[%s3 + $0x2c] sm:$0xf]
    %v2369 = vld [vmem:[%s3 + $0x30] sm:$0xf]
    %v2370 = vld [vmem:[%s3 + $0x34] sm:$0xf]
    %v2371 = vld [vmem:[%s3 + $0x38] sm:$0xf]
    %v2372 = vld [vmem:[%s3 + $0x3c] sm:$0xf]
    %v2373 = vld [vmem:[%s4] sm:$0x1]
    %v2375 = vlaneseq
    %v2376 = vshrl.u32 %v2375, 7
    %v2377 = vsub.s32 0, %v2376
    %v2378 = vrot.slane %v2373, %v2377
    %v2396 = vunpack.c.l.b16 %v2357
    %v2397 = vunpack.c.l.b16 %v2358
    %v2398 = vunpack.c.l.b16 %v2359
    %v2399 = vunpack.c.l.b16 %v2360
    %v2400 = vunpack.c.l.b16 %v2361
    %v2401 = vunpack.c.l.b16 %v2362
    %v2402 = vunpack.c.l.b16 %v2363
    %v2403 = vunpack.c.l.b16 %v2364
    %v2404 = vunpack.c.l.b16 %v2365
    %v2405 = vunpack.c.l.b16 %v2366
    %v2406 = vunpack.c.l.b16 %v2367
    %v2407 = vunpack.c.l.b16 %v2368
    %v2408 = vunpack.c.l.b16 %v2369
    %v2409 = vunpack.c.l.b16 %v2370
    %v2410 = vunpack.c.l.b16 %v2371
    %v2411 = vunpack.c.l.b16 %v2372
    %v2412 = vpack.c.b16 %v2397, %v2396
    %v2413 = vpack.c.b16 %v2399, %v2398
    %v2414 = vpack.c.b16 %v2401, %v2400
    %v2415 = vpack.c.b16 %v2403, %v2402
    %v2416 = vpack.c.b16 %v2405, %v2404
    %v2417 = vpack.c.b16 %v2407, %v2406
    %v2418 = vpack.c.b16 %v2409, %v2408
    %v2419 = vpack.c.b16 %v2411, %v2410
    %2428 = vmatprep.subr.bf16.mxu0 0
    %2429 = vmatpush1.bf16.msra.mxu0 %v2412
    %2430 = vmatprep.subr.bf16.mxu0 0
    %2431 = vmatpush1.bf16.msra.mxu0 %v2413
    %2432 = vmatprep.subr.bf16.mxu0 0
    %2433 = vmatpush1.bf16.msra.mxu0 %v2414
    %2434 = vmatprep.subr.bf16.mxu0 0
    %2435 = vmatpush1.bf16.msra.mxu0 %v2415
    %2436 = vmatprep.subr.bf16.mxu0 0
    %2437 = vmatpush1.bf16.msra.mxu0 %v2416
    %2438 = vmatprep.subr.bf16.mxu0 0
    %2439 = vmatpush1.bf16.msra.mxu0 %v2417
    %2440 = vmatprep.subr.bf16.mxu0 0
    %2441 = vmatpush1.bf16.msra.mxu0 %v2418
    %2442 = vmatprep.subr.bf16.mxu0 0
    %2443 = vmatpush1.bf16.msra.mxu0 %v2419
    %2444 = vmatprep.subr.bf16.mxu0 0
    %2445 = vmatpush1.bf16.msra.mxu0 0
    %2446 = vmatprep.subr.bf16.mxu0 0
    %2447 = vmatpush1.bf16.msra.mxu0 0
    %2448 = vmatprep.subr.bf16.mxu0 0
    %2449 = vmatpush1.bf16.msra.mxu0 0
    %2450 = vmatprep.subr.bf16.mxu0 0
    %2451 = vmatpush1.bf16.msra.mxu0 0
    %2452 = vmatprep.subr.bf16.mxu0 0
    %2453 = vmatpush1.bf16.msra.mxu0 0
    %2454 = vmatprep.subr.bf16.mxu0 0
    %2455 = vmatpush1.bf16.msra.mxu0 0
    %2456 = vmatprep.subr.bf16.mxu0 0
    %2457 = vmatpush1.bf16.msra.mxu0 0
    %2458 = vmatprep.subr.bf16.mxu0 0
    %2459 = vmatpush1.bf16.msra.mxu0 0
    %2460 = vmatprep.mubr.bf16.mxu0 0
    %2461 = vmatmul.mubr.bf16.gmra.mrb[0].mxu0 %v2346
    %v2462 = vpop.f32.mrb[0].mxu0
    %v2463 = vadd.f32 %v2378, %v2462
    %v2464 = vpop.f32.mrb[0].mxu0
    %v2465 = vpop.f32.mrb[0].mxu0
    %v2466 = vadd.f32 %v2378, %v2465
    %v2467 = vpop.f32.mrb[0].mxu0
    %2468 = vmatprep.mubr.bf16.mxu0 0
    %2469 = vmatmul.mubr.bf16.gmra.mrb[0].mxu0 %v2349
    %v2470 = vpop.f32.mrb[0].mxu0
    %v2471 = vadd.f32 %v2378, %v2470
    %v2472 = vpop.f32.mrb[0].mxu0
    %v2473 = vpop.f32.mrb[0].mxu0
    %v2474 = vadd.f32 %v2378, %v2473
    %v2475 = vpop.f32.mrb[0].mxu0
    %2476 = vmatprep.mubr.bf16.mxu0 0
    %2477 = vmatmul.mubr.bf16.gmra.mrb[0].mxu0 %v2352
    %v2478 = vpop.f32.mrb[0].mxu0
    %v2479 = vadd.f32 %v2378, %v2478
    %v2480 = vpop.f32.mrb[0].mxu0
    %v2481 = vpop.f32.mrb[0].mxu0
    %v2482 = vadd.f32 %v2378, %v2481
    %v2483 = vpop.f32.mrb[0].mxu0
    %2484 = vmatprep.mubr.bf16.mxu0 0
    %2485 = vmatmul.mubr.bf16.gmra.mrb[0].mxu0 %v2355
    %v2486 = vpop.f32.mrb[0].mxu0
    %v2487 = vadd.f32 %v2378, %v2486
    %v2488 = vpop.f32.mrb[0].mxu0
    %v2489 = vpop.f32.mrb[0].mxu0
    %v2490 = vadd.f32 %v2378, %v2489
    %v2491 = vpop.f32.mrb[0].mxu0
    %2492 = vdwg.mxu0
    %2493 = vst.msk [vmem:[#allocation2] sm:$0xff] %vm350, %v2463
    %2494 = vst.msk [vmem:[#allocation2 + $0x8] sm:$0xff] %vm350, %v2466
    %2495 = vst.msk [vmem:[#allocation2 + $0x10] sm:$0xff] %vm350, %v2471
    %2496 = vst.msk [vmem:[#allocation2 + $0x18] sm:$0xff] %vm350, %v2474
    %2497 = vst.msk [vmem:[#allocation2 + $0x20] sm:$0xff] %vm350, %v2479
    %2498 = vst.msk [vmem:[#allocation2 + $0x28] sm:$0xff] %vm350, %v2482
    %2499 = vst.msk [vmem:[#allocation2 + $0x30] sm:$0xff] %vm350, %v2487
    %2500 = vst.msk [vmem:[#allocation2 + $0x38] sm:$0xff] %vm350, %v2490
    // Predicated region
    $region22: #{conv_attention_layer.1} parent=1 // pred_check
      _
    $region23: #{conv_attention_layer.1} parent=1 // pred_check_branch
      %2502 = sbr.rel (0) target = $region25
    $region24: #{conv_attention_layer.1} parent=1 // pred_region
      %s2504 = ssub.s32 1024, 1024
      %2505 = vsyncadd [#allocation3], %s2504
      %s2506 = sshll.u32 [#allocation2], 4
      %s2507 = int_to_ptr.vmem [resolvable:$true] %s2506
      %2512 = dma.vmem_to_hbm [thread:$0]  %s2507, 1024, %s5, [#allocation3], 128, 128, 8
    $region25: #{conv_attention_layer.1} parent=1 // pred_fallthru
      _
    // Predicated region
    $region26: #{conv_attention_layer.1} parent=1 // pred_check
      _
    $region27: #{conv_attention_layer.1} parent=1 // pred_check_branch
      %2514 = sbr.rel (0) target = $region29
    $region28: #{conv_attention_layer.1} parent=1 // pred_region
      %2515 = dma.done [#allocation3], 1024
    $region29: #{conv_attention_layer.1} parent=1 // pred_fallthru
      _
    %2516 = vsyncpa [#allocation3], 1

</llo_original>
